<compile_context>
chip_gen: v5e
topology: v5e:2x2
jax: 0.10.0
libtpu: 0.0.40
codegen_flags: <defaults>
</compile_context>

<pallas_src>
import functools

import jax
import jax.numpy as jnp
import numpy as np
from jax.experimental import pallas as pl
from jax.experimental.pallas import tpu as pltpu


_VMEM_BUDGET = 28 * 1024 * 1024   # target working set (double-buffered blocks + scratch)
_VMEM_LIMIT = 40 * 1024 * 1024    # scoped-VMEM limit handed to the compiler
_ACC_REG_BUDGET = 32 * 1024       # live f32 register accumulator bytes per row band
_RB, _CB = 8, 128                 # (sublane, lane)-aligned staging offsets in the halo scratch


def _rup(n, m):
    return -(-n // m) * m


def _row_bands(H, W, band_rows=None):
    """Static row bands so the live register accumulator stays within budget."""
    if band_rows is None:
        th = (_ACC_REG_BUDGET // (_rup(W, 128) * 4)) // 8 * 8
        th = min(H, max(8, th))
    else:
        th = min(H, max(1, band_rows))
    return [(s, min(th, H - s)) for s in range(0, H, th)]


def _pick_c_chunk(C, KK, H, W, th_max, pad, x_itemsize, f_itemsize, o_itemsize):
    """Largest divisor of C whose double-buffered VMEM working set fits the budget."""
    plane = _rup(H, 8) * _rup(W, 128)
    xpad_bytes = _rup(_RB + th_max + 2 * pad, 8) * _rup(_CB + W + pad, 128) * 4

    def est(cc):
        return (2 * cc * plane * (KK * f_itemsize + x_itemsize)
                + 2 * plane * o_itemsize + plane * 4 + xpad_bytes)

    best = 1
    for cc in range(1, C + 1):
        if C % cc == 0 and est(cc) <= _VMEM_BUDGET:
            best = cc
    # TODO(synk): if even cc=1 exceeds the budget (very large H*W), add a spatial
    # grid axis over row bands (halo via manual DMA) instead of full-frame blocks.
    return best


def _dynfilter_kernel(x_ref, f_ref, o_ref, acc_ref, xpad_ref, *,
                      Cc, H, W, kH, kW, pad, bands, single_chunk):
    # x_ref   : (1, Cc, H, W)          un-padded input channels for this chunk
    # f_ref   : (1, Cc*kH*kW, H, W)    per-pixel filter weights for this chunk
    # o_ref   : (1, 1, H, W)           output
    # acc_ref : (H, W) float32         VMEM accumulator (multi-chunk path only)
    # xpad_ref: staging buffer holding one zero-padded channel row band
    KK = kH * kW

    if not single_chunk:
        @pl.when(pl.program_id(1) == 0)
        def _init():
            acc_ref[...] = jnp.zeros_like(acc_ref)

    for h0, th in bands:
        rlo = max(0, h0 - pad)            # first input row this band needs
        rhi = min(H, h0 + th + pad)       # one past the last input row it needs
        top = rlo - (h0 - pad)            # halo rows above the frame (zeros)
        nrows = rhi - rlo

        # The halo border must read back as zeros.  A full clear of the small
        # staging buffer is VMEM-store traffic only (negligible next to the
        # filter HBM stream) and keeps every store (8,128)-aligned.
        xpad_ref[...] = jnp.zeros_like(xpad_ref)

        band_acc = jnp.zeros((th, W), jnp.float32)
        for c in range(Cc):
            # Stage this channel's row band ONCE at an aligned offset; every
            # kH*kW shifted tap window below is a plain static re-slice of the
            # staged plane, so x never takes an HBM round trip through an XLA
            # pad op and padding costs no extra HBM bandwidth.
            xpad_ref[_RB:_RB + nrows, _CB:_CB + W] = (
                x_ref[0, c, rlo:rhi, :].astype(jnp.float32))
            for kj in range(kW):
                c0 = _CB - pad + kj
                for ki in range(kH):
                    r0 = _RB - top + ki
                    xs = xpad_ref[r0:r0 + th, c0:c0 + W]
                    w = f_ref[0, c * KK + ki * kW + kj,
                              h0:h0 + th, :].astype(jnp.float32)
                    band_acc = band_acc + xs * w

        if single_chunk:
            # Common case: whole channel range in one chunk -> write the band
            # straight to the output, skip the accumulator round trip.
            o_ref[0, 0, h0:h0 + th, :] = band_acc.astype(o_ref.dtype)
        else:
            acc_ref[h0:h0 + th, :] = acc_ref[h0:h0 + th, :] + band_acc

    if not single_chunk:
        @pl.when(pl.program_id(1) == pl.num_programs(1) - 1)
        def _finalize():
            o_ref[0, 0] = acc_ref[...].astype(o_ref.dtype)


def dyn_filter(x, filt, kernel_size=(3, 3), padding=1, c_chunk=None, band_rows=None):
    """x: (B, C, H, W); filt: (B, C*kH*kW, H, W) -> (B, 1, H, W)."""
    B, C, H, W = x.shape
    kH, kW = kernel_size
    KK = kH * kW
    assert filt.shape == (B, C * KK, H, W), filt.shape
    # "Same"-size local filter: the in-VMEM halo construction relies on it.
    assert kH == 2 * padding + 1 and kW == 2 * padding + 1
    assert 0 <= padding <= _RB

    bands = _row_bands(H, W, band_rows)
    th_max = max(th for _, th in bands)

    if c_chunk is None:
        c_chunk = _pick_c_chunk(C, KK, H, W, th_max, padding,
                                x.dtype.itemsize, filt.dtype.itemsize,
                                x.dtype.itemsize)
    assert C % c_chunk == 0, (C, c_chunk)
    n_chunks = C // c_chunk

    # TODO(synk): for W < 128 the NCHW layout is lane-sparse; a lane-dense
    # flattened (H*W) layout would need an in-kernel relayout of every shifted
    # window, so it is not done here (real frames have W >= 128).

    kernel = functools.partial(
        _dynfilter_kernel, Cc=c_chunk, H=H, W=W, kH=kH, kW=kW, pad=padding,
        bands=bands, single_chunk=(n_chunks == 1))

    return pl.pallas_call(
        kernel,
        out_shape=jax.ShapeDtypeStruct((B, 1, H, W), x.dtype),
        grid_spec=pltpu.PrefetchScalarGridSpec(
            num_scalar_prefetch=0,
            grid=(B, n_chunks),
            in_specs=[
                pl.BlockSpec((1, c_chunk, H, W), lambda b, c: (b, c, 0, 0)),
                pl.BlockSpec((1, c_chunk * KK, H, W), lambda b, c: (b, c, 0, 0)),
            ],
            out_specs=pl.BlockSpec((1, 1, H, W), lambda b, c: (b, 0, 0, 0)),
            scratch_shapes=[
                pltpu.VMEM((H, W), jnp.float32),
                pltpu.VMEM((_RB + th_max + 2 * padding, _CB + W + padding),
                           jnp.float32),
            ],
        ),
        compiler_params=pltpu.CompilerParams(
            dimension_semantics=("parallel", "arbitrary"),
            vmem_limit_bytes=_VMEM_LIMIT,
        ),
    )(x, filt)


def _reference(x, filt, kernel_size=(3, 3), padding=1):
    """Pure-JAX reference reproducing the PyTorch module."""
    B, C, H, W = x.shape
    kH, kW = kernel_size
    xp = jnp.pad(x, ((0, 0), (0, 0), (padding, padding), (padding, padding)))
    patches = []
    for c in range(C):
        for ki in range(kH):
            for kj in range(kW):
                patches.append(xp[:, c, ki:ki + H, kj:kj + W])
    x_localexpand = jnp.stack(patches, axis=1)  # (B, C*kH*kW, H, W)
    return jnp.sum(x_localexpand * filt, axis=1)[:, None]


if __name__ == "__main__":
    key = jax.random.PRNGKey(0)
    B, C, H, W = 2, 4, 16, 16
    kH, kW = 3, 3
    k1, k2 = jax.random.split(key)
    x = jax.random.normal(k1, (B, C, H, W), dtype=jnp.float32)
    filt = jax.random.normal(k2, (B, C * kH * kW, H, W), dtype=jnp.float32)

    ref = _reference(x, filt, kernel_size=(kH, kW), padding=1)

    # Auto chunking (single-chunk fast path at this size), a forced multi-chunk
    # run (reduction axis + scratch accumulator), and a forced multi-band run
    # (exercises the top/bottom halo and staging-buffer re-clear between bands).
    for cc, br in ((None, None), (2, None), (1, 8)):
        out = dyn_filter(x, filt, kernel_size=(kH, kW), padding=1,
                         c_chunk=cc, band_rows=br)
        out = jax.block_until_ready(out)
        assert out.shape == (B, 1, H, W)
        np.testing.assert_allclose(np.asarray(out), np.asarray(ref),
                                   rtol=1e-5, atol=1e-5)

    print("KERNEL_OK")
</pallas_src>

<mosaic_0001>
module attributes {stable_mosaic.version = 11 : i64} {
  func.func @_dynfilter_kernel(%arg0: i32, %arg1: i32, %arg2: memref<1x4x16x16xf32, #tpu.memory_space<vmem>>, %arg3: memref<1x36x16x16xf32, #tpu.memory_space<vmem>>, %arg4: memref<1x1x16x16xf32, #tpu.memory_space<vmem>>, %arg5: memref<16x16xf32, #tpu.memory_space<vmem>>, %arg6: memref<26x145xf32, #tpu.memory_space<vmem>>) attributes {dimension_semantics = [#tpu.dimension_semantics<parallel>, #tpu.dimension_semantics<arbitrary>], iteration_bounds = array<i64: 2, 1>, scalar_prefetch = 0 : i64, scratch_operands = 2 : i64, tpu.core_type = #tpu.core_type<tc>, window_params = [{transform_indices = @transform_0, window_bounds = array<i64: 1, 4, 16, 16>}, {transform_indices = @transform_1, window_bounds = array<i64: 1, 36, 16, 16>}, {transform_indices = @transform_2, window_bounds = array<i64: 1, 1, 16, 16>}]} {
    %cst = arith.constant 0.000000e+00 : f32
    %0 = vector.broadcast %cst : f32 to vector<26x145xf32>
    %c0 = arith.constant 0 : index
    %c0_0 = arith.constant 0 : index
    %1 = vector.load %arg6[%c0, %c0_0] : memref<26x145xf32, #tpu.memory_space<vmem>>, vector<26x145xf32>
    tpu.vector_store %arg6[%c0, %c0_0], %0 {strides = array<i32>} : memref<26x145xf32, #tpu.memory_space<vmem>>, vector<26x145xf32>,
    %cst_1 = arith.constant 0.000000e+00 : f32
    %2 = vector.broadcast %cst_1 : f32 to vector<16x16xf32>
    %c0_2 = arith.constant 0 : index
    %c0_3 = arith.constant 0 : index
    %c0_4 = arith.constant 0 : index
    %c0_5 = arith.constant 0 : index
    %3 = vector.load %arg2[%c0_2, %c0_3, %c0_4, %c0_5] : memref<1x4x16x16xf32, #tpu.memory_space<vmem>>, vector<1x1x16x16xf32>
    %4 = vector.shape_cast %3 : vector<1x1x16x16xf32> to vector<16x16xf32>
    %c8 = arith.constant 8 : index
    %c128 = arith.constant 128 : index
    %5 = vector.load %arg6[%c8, %c128] : memref<26x145xf32, #tpu.memory_space<vmem>>, vector<16x16xf32>
    tpu.vector_store %arg6[%c8, %c128], %4 {strides = array<i32>} : memref<26x145xf32, #tpu.memory_space<vmem>>, vector<16x16xf32>,
    %c7 = arith.constant 7 : index
    %c127 = arith.constant 127 : index
    %6 = vector.load %arg6[%c7, %c127] : memref<26x145xf32, #tpu.memory_space<vmem>>, vector<16x16xf32>
    %c0_6 = arith.constant 0 : index
    %c0_7 = arith.constant 0 : index
    %c0_8 = arith.constant 0 : index
    %c0_9 = arith.constant 0 : index
    %7 = vector.load %arg3[%c0_6, %c0_7, %c0_8, %c0_9] : memref<1x36x16x16xf32, #tpu.memory_space<vmem>>, vector<1x1x16x16xf32>
    %8 = vector.shape_cast %7 : vector<1x1x16x16xf32> to vector<16x16xf32>
    %9 = arith.mulf %6, %8 : vector<16x16xf32>
    %10 = arith.addf %2, %9 : vector<16x16xf32>
    %c8_10 = arith.constant 8 : index
    %c127_11 = arith.constant 127 : index
    %11 = vector.load %arg6[%c8_10, %c127_11] : memref<26x145xf32, #tpu.memory_space<vmem>>, vector<16x16xf32>
    %c0_12 = arith.constant 0 : index
    %c3 = arith.constant 3 : index
    %c0_13 = arith.constant 0 : index
    %c0_14 = arith.constant 0 : index
    %12 = vector.load %arg3[%c0_12, %c3, %c0_13, %c0_14] : memref<1x36x16x16xf32, #tpu.memory_space<vmem>>, vector<1x1x16x16xf32>
    %13 = vector.shape_cast %12 : vector<1x1x16x16xf32> to vector<16x16xf32>
    %14 = arith.mulf %11, %13 : vector<16x16xf32>
    %15 = arith.addf %10, %14 : vector<16x16xf32>
    %c9 = arith.constant 9 : index
    %c127_15 = arith.constant 127 : index
    %16 = vector.load %arg6[%c9, %c127_15] : memref<26x145xf32, #tpu.memory_space<vmem>>, vector<16x16xf32>
    %c0_16 = arith.constant 0 : index
    %c6 = arith.constant 6 : index
    %c0_17 = arith.constant 0 : index
    %c0_18 = arith.constant 0 : index
    %17 = vector.load %arg3[%c0_16, %c6, %c0_17, %c0_18] : memref<1x36x16x16xf32, #tpu.memory_space<vmem>>, vector<1x1x16x16xf32>
    %18 = vector.shape_cast %17 : vector<1x1x16x16xf32> to vector<16x16xf32>
    %19 = arith.mulf %16, %18 : vector<16x16xf32>
    %20 = arith.addf %15, %19 : vector<16x16xf32>
    %c7_19 = arith.constant 7 : index
    %c128_20 = arith.constant 128 : index
    %21 = vector.load %arg6[%c7_19, %c128_20] : memref<26x145xf32, #tpu.memory_space<vmem>>, vector<16x16xf32>
    %c0_21 = arith.constant 0 : index
    %c1 = arith.constant 1 : index
    %c0_22 = arith.constant 0 : index
    %c0_23 = arith.constant 0 : index
    %22 = vector.load %arg3[%c0_21, %c1, %c0_22, %c0_23] : memref<1x36x16x16xf32, #tpu.memory_space<vmem>>, vector<1x1x16x16xf32>
    %23 = vector.shape_cast %22 : vector<1x1x16x16xf32> to vector<16x16xf32>
    %24 = arith.mulf %21, %23 : vector<16x16xf32>
    %25 = arith.addf %20, %24 : vector<16x16xf32>
    %c8_24 = arith.constant 8 : index
    %c128_25 = arith.constant 128 : index
    %26 = vector.load %arg6[%c8_24, %c128_25] : memref<26x145xf32, #tpu.memory_space<vmem>>, vector<16x16xf32>
    %c0_26 = arith.constant 0 : index
    %c4 = arith.constant 4 : index
    %c0_27 = arith.constant 0 : index
    %c0_28 = arith.constant 0 : index
    %27 = vector.load %arg3[%c0_26, %c4, %c0_27, %c0_28] : memref<1x36x16x16xf32, #tpu.memory_space<vmem>>, vector<1x1x16x16xf32>
    %28 = vector.shape_cast %27 : vector<1x1x16x16xf32> to vector<16x16xf32>
    %29 = arith.mulf %26, %28 : vector<16x16xf32>
    %30 = arith.addf %25, %29 : vector<16x16xf32>
    %c9_29 = arith.constant 9 : index
    %c128_30 = arith.constant 128 : index
    %31 = vector.load %arg6[%c9_29, %c128_30] : memref<26x145xf32, #tpu.memory_space<vmem>>, vector<16x16xf32>
    %c0_31 = arith.constant 0 : index
    %c7_32 = arith.constant 7 : index
    %c0_33 = arith.constant 0 : index
    %c0_34 = arith.constant 0 : index
    %32 = vector.load %arg3[%c0_31, %c7_32, %c0_33, %c0_34] : memref<1x36x16x16xf32, #tpu.memory_space<vmem>>, vector<1x1x16x16xf32>
    %33 = vector.shape_cast %32 : vector<1x1x16x16xf32> to vector<16x16xf32>
    %34 = arith.mulf %31, %33 : vector<16x16xf32>
    %35 = arith.addf %30, %34 : vector<16x16xf32>
    %c7_35 = arith.constant 7 : index
    %c129 = arith.constant 129 : index
    %36 = vector.load %arg6[%c7_35, %c129] : memref<26x145xf32, #tpu.memory_space<vmem>>, vector<16x16xf32>
    %c0_36 = arith.constant 0 : index
    %c2 = arith.constant 2 : index
    %c0_37 = arith.constant 0 : index
    %c0_38 = arith.constant 0 : index
    %37 = vector.load %arg3[%c0_36, %c2, %c0_37, %c0_38] : memref<1x36x16x16xf32, #tpu.memory_space<vmem>>, vector<1x1x16x16xf32>
    %38 = vector.shape_cast %37 : vector<1x1x16x16xf32> to vector<16x16xf32>
    %39 = arith.mulf %36, %38 : vector<16x16xf32>
    %40 = arith.addf %35, %39 : vector<16x16xf32>
    %c8_39 = arith.constant 8 : index
    %c129_40 = arith.constant 129 : index
    %41 = vector.load %arg6[%c8_39, %c129_40] : memref<26x145xf32, #tpu.memory_space<vmem>>, vector<16x16xf32>
    %c0_41 = arith.constant 0 : index
    %c5 = arith.constant 5 : index
    %c0_42 = arith.constant 0 : index
    %c0_43 = arith.constant 0 : index
    %42 = vector.load %arg3[%c0_41, %c5, %c0_42, %c0_43] : memref<1x36x16x16xf32, #tpu.memory_space<vmem>>, vector<1x1x16x16xf32>
    %43 = vector.shape_cast %42 : vector<1x1x16x16xf32> to vector<16x16xf32>
    %44 = arith.mulf %41, %43 : vector<16x16xf32>
    %45 = arith.addf %40, %44 : vector<16x16xf32>
    %c9_44 = arith.constant 9 : index
    %c129_45 = arith.constant 129 : index
    %46 = vector.load %arg6[%c9_44, %c129_45] : memref<26x145xf32, #tpu.memory_space<vmem>>, vector<16x16xf32>
    %c0_46 = arith.constant 0 : index
    %c8_47 = arith.constant 8 : index
    %c0_48 = arith.constant 0 : index
    %c0_49 = arith.constant 0 : index
    %47 = vector.load %arg3[%c0_46, %c8_47, %c0_48, %c0_49] : memref<1x36x16x16xf32, #tpu.memory_space<vmem>>, vector<1x1x16x16xf32>
    %48 = vector.shape_cast %47 : vector<1x1x16x16xf32> to vector<16x16xf32>
    %49 = arith.mulf %46, %48 : vector<16x16xf32>
    %50 = arith.addf %45, %49 : vector<16x16xf32>
    %c0_50 = arith.constant 0 : index
    %c1_51 = arith.constant 1 : index
    %c0_52 = arith.constant 0 : index
    %c0_53 = arith.constant 0 : index
    %51 = vector.load %arg2[%c0_50, %c1_51, %c0_52, %c0_53] : memref<1x4x16x16xf32, #tpu.memory_space<vmem>>, vector<1x1x16x16xf32>
    %52 = vector.shape_cast %51 : vector<1x1x16x16xf32> to vector<16x16xf32>
    %c8_54 = arith.constant 8 : index
    %c128_55 = arith.constant 128 : index
    %53 = vector.load %arg6[%c8_54, %c128_55] : memref<26x145xf32, #tpu.memory_space<vmem>>, vector<16x16xf32>
    tpu.vector_store %arg6[%c8_54, %c128_55], %52 {strides = array<i32>} : memref<26x145xf32, #tpu.memory_space<vmem>>, vector<16x16xf32>,
    %c7_56 = arith.constant 7 : index
    %c127_57 = arith.constant 127 : index
    %54 = vector.load %arg6[%c7_56, %c127_57] : memref<26x145xf32, #tpu.memory_space<vmem>>, vector<16x16xf32>
    %c0_58 = arith.constant 0 : index
    %c9_59 = arith.constant 9 : index
    %c0_60 = arith.constant 0 : index
    %c0_61 = arith.constant 0 : index
    %55 = vector.load %arg3[%c0_58, %c9_59, %c0_60, %c0_61] : memref<1x36x16x16xf32, #tpu.memory_space<vmem>>, vector<1x1x16x16xf32>
    %56 = vector.shape_cast %55 : vector<1x1x16x16xf32> to vector<16x16xf32>
    %57 = arith.mulf %54, %56 : vector<16x16xf32>
    %58 = arith.addf %50, %57 : vector<16x16xf32>
    %c8_62 = arith.constant 8 : index
    %c127_63 = arith.constant 127 : index
    %59 = vector.load %arg6[%c8_62, %c127_63] : memref<26x145xf32, #tpu.memory_space<vmem>>, vector<16x16xf32>
    %c0_64 = arith.constant 0 : index
    %c12 = arith.constant 12 : index
    %c0_65 = arith.constant 0 : index
    %c0_66 = arith.constant 0 : index
    %60 = vector.load %arg3[%c0_64, %c12, %c0_65, %c0_66] : memref<1x36x16x16xf32, #tpu.memory_space<vmem>>, vector<1x1x16x16xf32>
    %61 = vector.shape_cast %60 : vector<1x1x16x16xf32> to vector<16x16xf32>
    %62 = arith.mulf %59, %61 : vector<16x16xf32>
    %63 = arith.addf %58, %62 : vector<16x16xf32>
    %c9_67 = arith.constant 9 : index
    %c127_68 = arith.constant 127 : index
    %64 = vector.load %arg6[%c9_67, %c127_68] : memref<26x145xf32, #tpu.memory_space<vmem>>, vector<16x16xf32>
    %c0_69 = arith.constant 0 : index
    %c15 = arith.constant 15 : index
    %c0_70 = arith.constant 0 : index
    %c0_71 = arith.constant 0 : index
    %65 = vector.load %arg3[%c0_69, %c15, %c0_70, %c0_71] : memref<1x36x16x16xf32, #tpu.memory_space<vmem>>, vector<1x1x16x16xf32>
    %66 = vector.shape_cast %65 : vector<1x1x16x16xf32> to vector<16x16xf32>
    %67 = arith.mulf %64, %66 : vector<16x16xf32>
    %68 = arith.addf %63, %67 : vector<16x16xf32>
    %c7_72 = arith.constant 7 : index
    %c128_73 = arith.constant 128 : index
    %69 = vector.load %arg6[%c7_72, %c128_73] : memref<26x145xf32, #tpu.memory_space<vmem>>, vector<16x16xf32>
    %c0_74 = arith.constant 0 : index
    %c10 = arith.constant 10 : index
    %c0_75 = arith.constant 0 : index
    %c0_76 = arith.constant 0 : index
    %70 = vector.load %arg3[%c0_74, %c10, %c0_75, %c0_76] : memref<1x36x16x16xf32, #tpu.memory_space<vmem>>, vector<1x1x16x16xf32>
    %71 = vector.shape_cast %70 : vector<1x1x16x16xf32> to vector<16x16xf32>
    %72 = arith.mulf %69, %71 : vector<16x16xf32>
    %73 = arith.addf %68, %72 : vector<16x16xf32>
    %c8_77 = arith.constant 8 : index
    %c128_78 = arith.constant 128 : index
    %74 = vector.load %arg6[%c8_77, %c128_78] : memref<26x145xf32, #tpu.memory_space<vmem>>, vector<16x16xf32>
    %c0_79 = arith.constant 0 : index
    %c13 = arith.constant 13 : index
    %c0_80 = arith.constant 0 : index
    %c0_81 = arith.constant 0 : index
    %75 = vector.load %arg3[%c0_79, %c13, %c0_80, %c0_81] : memref<1x36x16x16xf32, #tpu.memory_space<vmem>>, vector<1x1x16x16xf32>
    %76 = vector.shape_cast %75 : vector<1x1x16x16xf32> to vector<16x16xf32>
    %77 = arith.mulf %74, %76 : vector<16x16xf32>
    %78 = arith.addf %73, %77 : vector<16x16xf32>
    %c9_82 = arith.constant 9 : index
    %c128_83 = arith.constant 128 : index
    %79 = vector.load %arg6[%c9_82, %c128_83] : memref<26x145xf32, #tpu.memory_space<vmem>>, vector<16x16xf32>
    %c0_84 = arith.constant 0 : index
    %c16 = arith.constant 16 : index
    %c0_85 = arith.constant 0 : index
    %c0_86 = arith.constant 0 : index
    %80 = vector.load %arg3[%c0_84, %c16, %c0_85, %c0_86] : memref<1x36x16x16xf32, #tpu.memory_space<vmem>>, vector<1x1x16x16xf32>
    %81 = vector.shape_cast %80 : vector<1x1x16x16xf32> to vector<16x16xf32>
    %82 = arith.mulf %79, %81 : vector<16x16xf32>
    %83 = arith.addf %78, %82 : vector<16x16xf32>
    %c7_87 = arith.constant 7 : index
    %c129_88 = arith.constant 129 : index
    %84 = vector.load %arg6[%c7_87, %c129_88] : memref<26x145xf32, #tpu.memory_space<vmem>>, vector<16x16xf32>
    %c0_89 = arith.constant 0 : index
    %c11 = arith.constant 11 : index
    %c0_90 = arith.constant 0 : index
    %c0_91 = arith.constant 0 : index
    %85 = vector.load %arg3[%c0_89, %c11, %c0_90, %c0_91] : memref<1x36x16x16xf32, #tpu.memory_space<vmem>>, vector<1x1x16x16xf32>
    %86 = vector.shape_cast %85 : vector<1x1x16x16xf32> to vector<16x16xf32>
    %87 = arith.mulf %84, %86 : vector<16x16xf32>
    %88 = arith.addf %83, %87 : vector<16x16xf32>
    %c8_92 = arith.constant 8 : index
    %c129_93 = arith.constant 129 : index
    %89 = vector.load %arg6[%c8_92, %c129_93] : memref<26x145xf32, #tpu.memory_space<vmem>>, vector<16x16xf32>
    %c0_94 = arith.constant 0 : index
    %c14 = arith.constant 14 : index
    %c0_95 = arith.constant 0 : index
    %c0_96 = arith.constant 0 : index
    %90 = vector.load %arg3[%c0_94, %c14, %c0_95, %c0_96] : memref<1x36x16x16xf32, #tpu.memory_space<vmem>>, vector<1x1x16x16xf32>
    %91 = vector.shape_cast %90 : vector<1x1x16x16xf32> to vector<16x16xf32>
    %92 = arith.mulf %89, %91 : vector<16x16xf32>
    %93 = arith.addf %88, %92 : vector<16x16xf32>
    %c9_97 = arith.constant 9 : index
    %c129_98 = arith.constant 129 : index
    %94 = vector.load %arg6[%c9_97, %c129_98] : memref<26x145xf32, #tpu.memory_space<vmem>>, vector<16x16xf32>
    %c0_99 = arith.constant 0 : index
    %c17 = arith.constant 17 : index
    %c0_100 = arith.constant 0 : index
    %c0_101 = arith.constant 0 : index
    %95 = vector.load %arg3[%c0_99, %c17, %c0_100, %c0_101] : memref<1x36x16x16xf32, #tpu.memory_space<vmem>>, vector<1x1x16x16xf32>
    %96 = vector.shape_cast %95 : vector<1x1x16x16xf32> to vector<16x16xf32>
    %97 = arith.mulf %94, %96 : vector<16x16xf32>
    %98 = arith.addf %93, %97 : vector<16x16xf32>
    %c0_102 = arith.constant 0 : index
    %c2_103 = arith.constant 2 : index
    %c0_104 = arith.constant 0 : index
    %c0_105 = arith.constant 0 : index
    %99 = vector.load %arg2[%c0_102, %c2_103, %c0_104, %c0_105] : memref<1x4x16x16xf32, #tpu.memory_space<vmem>>, vector<1x1x16x16xf32>
    %100 = vector.shape_cast %99 : vector<1x1x16x16xf32> to vector<16x16xf32>
    %c8_106 = arith.constant 8 : index
    %c128_107 = arith.constant 128 : index
    %101 = vector.load %arg6[%c8_106, %c128_107] : memref<26x145xf32, #tpu.memory_space<vmem>>, vector<16x16xf32>
    tpu.vector_store %arg6[%c8_106, %c128_107], %100 {strides = array<i32>} : memref<26x145xf32, #tpu.memory_space<vmem>>, vector<16x16xf32>,
    %c7_108 = arith.constant 7 : index
    %c127_109 = arith.constant 127 : index
    %102 = vector.load %arg6[%c7_108, %c127_109] : memref<26x145xf32, #tpu.memory_space<vmem>>, vector<16x16xf32>
    %c0_110 = arith.constant 0 : index
    %c18 = arith.constant 18 : index
    %c0_111 = arith.constant 0 : index
    %c0_112 = arith.constant 0 : index
    %103 = vector.load %arg3[%c0_110, %c18, %c0_111, %c0_112] : memref<1x36x16x16xf32, #tpu.memory_space<vmem>>, vector<1x1x16x16xf32>
    %104 = vector.shape_cast %103 : vector<1x1x16x16xf32> to vector<16x16xf32>
    %105 = arith.mulf %102, %104 : vector<16x16xf32>
    %106 = arith.addf %98, %105 : vector<16x16xf32>
    %c8_113 = arith.constant 8 : index
    %c127_114 = arith.constant 127 : index
    %107 = vector.load %arg6[%c8_113, %c127_114] : memref<26x145xf32, #tpu.memory_space<vmem>>, vector<16x16xf32>
    %c0_115 = arith.constant 0 : index
    %c21 = arith.constant 21 : index
    %c0_116 = arith.constant 0 : index
    %c0_117 = arith.constant 0 : index
    %108 = vector.load %arg3[%c0_115, %c21, %c0_116, %c0_117] : memref<1x36x16x16xf32, #tpu.memory_space<vmem>>, vector<1x1x16x16xf32>
    %109 = vector.shape_cast %108 : vector<1x1x16x16xf32> to vector<16x16xf32>
    %110 = arith.mulf %107, %109 : vector<16x16xf32>
    %111 = arith.addf %106, %110 : vector<16x16xf32>
    %c9_118 = arith.constant 9 : index
    %c127_119 = arith.constant 127 : index
    %112 = vector.load %arg6[%c9_118, %c127_119] : memref<26x145xf32, #tpu.memory_space<vmem>>, vector<16x16xf32>
    %c0_120 = arith.constant 0 : index
    %c24 = arith.constant 24 : index
    %c0_121 = arith.constant 0 : index
    %c0_122 = arith.constant 0 : index
    %113 = vector.load %arg3[%c0_120, %c24, %c0_121, %c0_122] : memref<1x36x16x16xf32, #tpu.memory_space<vmem>>, vector<1x1x16x16xf32>
    %114 = vector.shape_cast %113 : vector<1x1x16x16xf32> to vector<16x16xf32>
    %115 = arith.mulf %112, %114 : vector<16x16xf32>
    %116 = arith.addf %111, %115 : vector<16x16xf32>
    %c7_123 = arith.constant 7 : index
    %c128_124 = arith.constant 128 : index
    %117 = vector.load %arg6[%c7_123, %c128_124] : memref<26x145xf32, #tpu.memory_space<vmem>>, vector<16x16xf32>
    %c0_125 = arith.constant 0 : index
    %c19 = arith.constant 19 : index
    %c0_126 = arith.constant 0 : index
    %c0_127 = arith.constant 0 : index
    %118 = vector.load %arg3[%c0_125, %c19, %c0_126, %c0_127] : memref<1x36x16x16xf32, #tpu.memory_space<vmem>>, vector<1x1x16x16xf32>
    %119 = vector.shape_cast %118 : vector<1x1x16x16xf32> to vector<16x16xf32>
    %120 = arith.mulf %117, %119 : vector<16x16xf32>
    %121 = arith.addf %116, %120 : vector<16x16xf32>
    %c8_128 = arith.constant 8 : index
    %c128_129 = arith.constant 128 : index
    %122 = vector.load %arg6[%c8_128, %c128_129] : memref<26x145xf32, #tpu.memory_space<vmem>>, vector<16x16xf32>
    %c0_130 = arith.constant 0 : index
    %c22 = arith.constant 22 : index
    %c0_131 = arith.constant 0 : index
    %c0_132 = arith.constant 0 : index
    %123 = vector.load %arg3[%c0_130, %c22, %c0_131, %c0_132] : memref<1x36x16x16xf32, #tpu.memory_space<vmem>>, vector<1x1x16x16xf32>
    %124 = vector.shape_cast %123 : vector<1x1x16x16xf32> to vector<16x16xf32>
    %125 = arith.mulf %122, %124 : vector<16x16xf32>
    %126 = arith.addf %121, %125 : vector<16x16xf32>
    %c9_133 = arith.constant 9 : index
    %c128_134 = arith.constant 128 : index
    %127 = vector.load %arg6[%c9_133, %c128_134] : memref<26x145xf32, #tpu.memory_space<vmem>>, vector<16x16xf32>
    %c0_135 = arith.constant 0 : index
    %c25 = arith.constant 25 : index
    %c0_136 = arith.constant 0 : index
    %c0_137 = arith.constant 0 : index
    %128 = vector.load %arg3[%c0_135, %c25, %c0_136, %c0_137] : memref<1x36x16x16xf32, #tpu.memory_space<vmem>>, vector<1x1x16x16xf32>
    %129 = vector.shape_cast %128 : vector<1x1x16x16xf32> to vector<16x16xf32>
    %130 = arith.mulf %127, %129 : vector<16x16xf32>
    %131 = arith.addf %126, %130 : vector<16x16xf32>
    %c7_138 = arith.constant 7 : index
    %c129_139 = arith.constant 129 : index
    %132 = vector.load %arg6[%c7_138, %c129_139] : memref<26x145xf32, #tpu.memory_space<vmem>>, vector<16x16xf32>
    %c0_140 = arith.constant 0 : index
    %c20 = arith.constant 20 : index
    %c0_141 = arith.constant 0 : index
    %c0_142 = arith.constant 0 : index
    %133 = vector.load %arg3[%c0_140, %c20, %c0_141, %c0_142] : memref<1x36x16x16xf32, #tpu.memory_space<vmem>>, vector<1x1x16x16xf32>
    %134 = vector.shape_cast %133 : vector<1x1x16x16xf32> to vector<16x16xf32>
    %135 = arith.mulf %132, %134 : vector<16x16xf32>
    %136 = arith.addf %131, %135 : vector<16x16xf32>
    %c8_143 = arith.constant 8 : index
    %c129_144 = arith.constant 129 : index
    %137 = vector.load %arg6[%c8_143, %c129_144] : memref<26x145xf32, #tpu.memory_space<vmem>>, vector<16x16xf32>
    %c0_145 = arith.constant 0 : index
    %c23 = arith.constant 23 : index
    %c0_146 = arith.constant 0 : index
    %c0_147 = arith.constant 0 : index
    %138 = vector.load %arg3[%c0_145, %c23, %c0_146, %c0_147] : memref<1x36x16x16xf32, #tpu.memory_space<vmem>>, vector<1x1x16x16xf32>
    %139 = vector.shape_cast %138 : vector<1x1x16x16xf32> to vector<16x16xf32>
    %140 = arith.mulf %137, %139 : vector<16x16xf32>
    %141 = arith.addf %136, %140 : vector<16x16xf32>
    %c9_148 = arith.constant 9 : index
    %c129_149 = arith.constant 129 : index
    %142 = vector.load %arg6[%c9_148, %c129_149] : memref<26x145xf32, #tpu.memory_space<vmem>>, vector<16x16xf32>
    %c0_150 = arith.constant 0 : index
    %c26 = arith.constant 26 : index
    %c0_151 = arith.constant 0 : index
    %c0_152 = arith.constant 0 : index
    %143 = vector.load %arg3[%c0_150, %c26, %c0_151, %c0_152] : memref<1x36x16x16xf32, #tpu.memory_space<vmem>>, vector<1x1x16x16xf32>
    %144 = vector.shape_cast %143 : vector<1x1x16x16xf32> to vector<16x16xf32>
    %145 = arith.mulf %142, %144 : vector<16x16xf32>
    %146 = arith.addf %141, %145 : vector<16x16xf32>
    %c0_153 = arith.constant 0 : index
    %c3_154 = arith.constant 3 : index
    %c0_155 = arith.constant 0 : index
    %c0_156 = arith.constant 0 : index
    %147 = vector.load %arg2[%c0_153, %c3_154, %c0_155, %c0_156] : memref<1x4x16x16xf32, #tpu.memory_space<vmem>>, vector<1x1x16x16xf32>
    %148 = vector.shape_cast %147 : vector<1x1x16x16xf32> to vector<16x16xf32>
    %c8_157 = arith.constant 8 : index
    %c128_158 = arith.constant 128 : index
    %149 = vector.load %arg6[%c8_157, %c128_158] : memref<26x145xf32, #tpu.memory_space<vmem>>, vector<16x16xf32>
    tpu.vector_store %arg6[%c8_157, %c128_158], %148 {strides = array<i32>} : memref<26x145xf32, #tpu.memory_space<vmem>>, vector<16x16xf32>,
    %c7_159 = arith.constant 7 : index
    %c127_160 = arith.constant 127 : index
    %150 = vector.load %arg6[%c7_159, %c127_160] : memref<26x145xf32, #tpu.memory_space<vmem>>, vector<16x16xf32>
    %c0_161 = arith.constant 0 : index
    %c27 = arith.constant 27 : index
    %c0_162 = arith.constant 0 : index
    %c0_163 = arith.constant 0 : index
    %151 = vector.load %arg3[%c0_161, %c27, %c0_162, %c0_163] : memref<1x36x16x16xf32, #tpu.memory_space<vmem>>, vector<1x1x16x16xf32>
    %152 = vector.shape_cast %151 : vector<1x1x16x16xf32> to vector<16x16xf32>
    %153 = arith.mulf %150, %152 : vector<16x16xf32>
    %154 = arith.addf %146, %153 : vector<16x16xf32>
    %c8_164 = arith.constant 8 : index
    %c127_165 = arith.constant 127 : index
    %155 = vector.load %arg6[%c8_164, %c127_165] : memref<26x145xf32, #tpu.memory_space<vmem>>, vector<16x16xf32>
    %c0_166 = arith.constant 0 : index
    %c30 = arith.constant 30 : index
    %c0_167 = arith.constant 0 : index
    %c0_168 = arith.constant 0 : index
    %156 = vector.load %arg3[%c0_166, %c30, %c0_167, %c0_168] : memref<1x36x16x16xf32, #tpu.memory_space<vmem>>, vector<1x1x16x16xf32>
    %157 = vector.shape_cast %156 : vector<1x1x16x16xf32> to vector<16x16xf32>
    %158 = arith.mulf %155, %157 : vector<16x16xf32>
    %159 = arith.addf %154, %158 : vector<16x16xf32>
    %c9_169 = arith.constant 9 : index
    %c127_170 = arith.constant 127 : index
    %160 = vector.load %arg6[%c9_169, %c127_170] : memref<26x145xf32, #tpu.memory_space<vmem>>, vector<16x16xf32>
    %c0_171 = arith.constant 0 : index
    %c33 = arith.constant 33 : index
    %c0_172 = arith.constant 0 : index
    %c0_173 = arith.constant 0 : index
    %161 = vector.load %arg3[%c0_171, %c33, %c0_172, %c0_173] : memref<1x36x16x16xf32, #tpu.memory_space<vmem>>, vector<1x1x16x16xf32>
    %162 = vector.shape_cast %161 : vector<1x1x16x16xf32> to vector<16x16xf32>
    %163 = arith.mulf %160, %162 : vector<16x16xf32>
    %164 = arith.addf %159, %163 : vector<16x16xf32>
    %c7_174 = arith.constant 7 : index
    %c128_175 = arith.constant 128 : index
    %165 = vector.load %arg6[%c7_174, %c128_175] : memref<26x145xf32, #tpu.memory_space<vmem>>, vector<16x16xf32>
    %c0_176 = arith.constant 0 : index
    %c28 = arith.constant 28 : index
    %c0_177 = arith.constant 0 : index
    %c0_178 = arith.constant 0 : index
    %166 = vector.load %arg3[%c0_176, %c28, %c0_177, %c0_178] : memref<1x36x16x16xf32, #tpu.memory_space<vmem>>, vector<1x1x16x16xf32>
    %167 = vector.shape_cast %166 : vector<1x1x16x16xf32> to vector<16x16xf32>
    %168 = arith.mulf %165, %167 : vector<16x16xf32>
    %169 = arith.addf %164, %168 : vector<16x16xf32>
    %c8_179 = arith.constant 8 : index
    %c128_180 = arith.constant 128 : index
    %170 = vector.load %arg6[%c8_179, %c128_180] : memref<26x145xf32, #tpu.memory_space<vmem>>, vector<16x16xf32>
    %c0_181 = arith.constant 0 : index
    %c31 = arith.constant 31 : index
    %c0_182 = arith.constant 0 : index
    %c0_183 = arith.constant 0 : index
    %171 = vector.load %arg3[%c0_181, %c31, %c0_182, %c0_183] : memref<1x36x16x16xf32, #tpu.memory_space<vmem>>, vector<1x1x16x16xf32>
    %172 = vector.shape_cast %171 : vector<1x1x16x16xf32> to vector<16x16xf32>
    %173 = arith.mulf %170, %172 : vector<16x16xf32>
    %174 = arith.addf %169, %173 : vector<16x16xf32>
    %c9_184 = arith.constant 9 : index
    %c128_185 = arith.constant 128 : index
    %175 = vector.load %arg6[%c9_184, %c128_185] : memref<26x145xf32, #tpu.memory_space<vmem>>, vector<16x16xf32>
    %c0_186 = arith.constant 0 : index
    %c34 = arith.constant 34 : index
    %c0_187 = arith.constant 0 : index
    %c0_188 = arith.constant 0 : index
    %176 = vector.load %arg3[%c0_186, %c34, %c0_187, %c0_188] : memref<1x36x16x16xf32, #tpu.memory_space<vmem>>, vector<1x1x16x16xf32>
    %177 = vector.shape_cast %176 : vector<1x1x16x16xf32> to vector<16x16xf32>
    %178 = arith.mulf %175, %177 : vector<16x16xf32>
    %179 = arith.addf %174, %178 : vector<16x16xf32>
    %c7_189 = arith.constant 7 : index
    %c129_190 = arith.constant 129 : index
    %180 = vector.load %arg6[%c7_189, %c129_190] : memref<26x145xf32, #tpu.memory_space<vmem>>, vector<16x16xf32>
    %c0_191 = arith.constant 0 : index
    %c29 = arith.constant 29 : index
    %c0_192 = arith.constant 0 : index
    %c0_193 = arith.constant 0 : index
    %181 = vector.load %arg3[%c0_191, %c29, %c0_192, %c0_193] : memref<1x36x16x16xf32, #tpu.memory_space<vmem>>, vector<1x1x16x16xf32>
    %182 = vector.shape_cast %181 : vector<1x1x16x16xf32> to vector<16x16xf32>
    %183 = arith.mulf %180, %182 : vector<16x16xf32>
    %184 = arith.addf %179, %183 : vector<16x16xf32>
    %c8_194 = arith.constant 8 : index
    %c129_195 = arith.constant 129 : index
    %185 = vector.load %arg6[%c8_194, %c129_195] : memref<26x145xf32, #tpu.memory_space<vmem>>, vector<16x16xf32>
    %c0_196 = arith.constant 0 : index
    %c32 = arith.constant 32 : index
    %c0_197 = arith.constant 0 : index
    %c0_198 = arith.constant 0 : index
    %186 = vector.load %arg3[%c0_196, %c32, %c0_197, %c0_198] : memref<1x36x16x16xf32, #tpu.memory_space<vmem>>, vector<1x1x16x16xf32>
    %187 = vector.shape_cast %186 : vector<1x1x16x16xf32> to vector<16x16xf32>
    %188 = arith.mulf %185, %187 : vector<16x16xf32>
    %189 = arith.addf %184, %188 : vector<16x16xf32>
    %c9_199 = arith.constant 9 : index
    %c129_200 = arith.constant 129 : index
    %190 = vector.load %arg6[%c9_199, %c129_200] : memref<26x145xf32, #tpu.memory_space<vmem>>, vector<16x16xf32>
    %c0_201 = arith.constant 0 : index
    %c35 = arith.constant 35 : index
    %c0_202 = arith.constant 0 : index
    %c0_203 = arith.constant 0 : index
    %191 = vector.load %arg3[%c0_201, %c35, %c0_202, %c0_203] : memref<1x36x16x16xf32, #tpu.memory_space<vmem>>, vector<1x1x16x16xf32>
    %192 = vector.shape_cast %191 : vector<1x1x16x16xf32> to vector<16x16xf32>
    %193 = arith.mulf %190, %192 : vector<16x16xf32>
    %194 = arith.addf %189, %193 : vector<16x16xf32>
    %c0_204 = arith.constant 0 : index
    %c0_205 = arith.constant 0 : index
    %c0_206 = arith.constant 0 : index
    %c0_207 = arith.constant 0 : index
    %195 = vector.load %arg4[%c0_204, %c0_205, %c0_206, %c0_207] : memref<1x1x16x16xf32, #tpu.memory_space<vmem>>, vector<1x1x16x16xf32>
    %196 = vector.shape_cast %195 : vector<1x1x16x16xf32> to vector<16x16xf32>
    %197 = vector.shape_cast %194 : vector<16x16xf32> to vector<1x1x16x16xf32>
    tpu.vector_store %arg4[%c0_204, %c0_205, %c0_206, %c0_207], %197 {strides = array<i32>} : memref<1x1x16x16xf32, #tpu.memory_space<vmem>>, vector<1x1x16x16xf32>,
    return
  }
  func.func @transform_0(%arg0: i32, %arg1: i32) -> (i32, i32, i32, i32) {
    %c0_i32 = arith.constant 0 : i32
    %c0_i32_0 = arith.constant 0 : i32
    %c0_i32_1 = arith.constant 0 : i32
    return %arg0, %arg1, %c0_i32, %c0_i32_0 : i32, i32, i32, i32
  }
  func.func @transform_1(%arg0: i32, %arg1: i32) -> (i32, i32, i32, i32) {
    %c0_i32 = arith.constant 0 : i32
    %c0_i32_0 = arith.constant 0 : i32
    %c0_i32_1 = arith.constant 0 : i32
    return %arg0, %arg1, %c0_i32, %c0_i32_0 : i32, i32, i32, i32
  }
  func.func @transform_2(%arg0: i32, %arg1: i32) -> (i32, i32, i32, i32) {
    %c0_i32 = arith.constant 0 : i32
    %c0_i32_0 = arith.constant 0 : i32
    %c0_i32_1 = arith.constant 0 : i32
    %c0_i32_2 = arith.constant 0 : i32
    return %arg0, %c0_i32, %c0_i32_0, %c0_i32_1 : i32, i32, i32, i32
  }
}

</mosaic_0001>

<llo_original>
// kernel: tpu_custom_call.1
$region0: #{tpu_custom_call.1}
  #allocation0 [shape = 'u32[]', space=smem, size = 0x4, offset = 0x4, fixed_abs, tag = 'smem constant byte address 0x4 - core index']
  #allocation1 [shape = 'u32[72,128]{1,0:T(1,128)}', space=vmem, size = 0x9000, scoped, tag = 'internal scratch']
  #allocation2 [shape = 'f32[16,16]{1,0:T(8,128)}', space=vmem, size = 0x2000, scoped, tag = 'scratch operand']
  #allocation3 [shape = 'f32[26,145]{1,0:T(8,128)}', space=vmem, size = 0x8000, scoped, tag = 'scratch operand']
  %s0 = inlined_call_operand.vmem [shape: f32[2,4,16,16], index: 0, kind: input, shape index: {}]
  %s1 = inlined_call_operand.vmem [shape: f32[2,36,16,16], index: 1, kind: input, shape index: {}]
  %s2 = inlined_call_operand.hbm [shape: f32[2,1,16,16], index: 2, kind: output, shape index: {}]
  %s3 = sld [smem:[#allocation0]]
  $region41: #{tpu_custom_call.1} parent=0
    _
  %s5 = ssub.s32 1, %s3
  %s6 = scalar_select 0, %s5, %s3
  $region1: #{tpu_custom_call.1} parent=0
    #allocation4 [shape = 'u8[16384]{0}', space=vmem, size = 0x4000, scoped, tag = 'output window, operand 0']
    #allocation5 [shape = 's32[2]{0}', space=sflag, size = 0x8, scoped, tag = 'scoped memory for tpu_custom_call.1']
    %7 = vsyncpa [#allocation5], 0
    %s8 = scalar_lea.sflag [#allocation5], 1
    %9 = vsyncpa %s8, 0
    loop: start=0, step=1, limit=4
    $region2: #{tpu_custom_call.1} parent=1 // loop_pre_header
      _
    $region3: #{tpu_custom_call.1} parent=1 // loop_header
      %s11 = sphi 0, %s15
      %p12 = scmp.ge.s32.totalorder %s11, 4
      %s18 = sphi 0, %s30
      %s19 = sphi 0, %s26
      %s20 = sphi 0, %s18
      %s21 = sphi 0, %s19
      %s22 = sphi 0, %s20
      %s23 = sphi 0, %s21
      %s35 = sphi 0, %s37
      %s38 = sphi 0, %s35
      %s39 = sphi 0, %s38
      %s55 = sphi 0, %s39
      %s63 = sphi 0, %s65
      %s66 = sphi 0, %s63
      %s67 = sphi 0, %s66
      %s83 = sphi 0, %s67
      %s89 = sphi 0, %s91
      %s92 = sphi 0, %s89
      %s93 = sphi 0, %s92
      %s109 = sphi 0, %s93
    $region4: #{tpu_custom_call.1} parent=1 // loop_header_branch
      %14 = sbr.rel (%p12) target = $region8
    $region5: #{tpu_custom_call.1} parent=1 // loop_body
      %s16 = ssub.s32 %s11, 1
      %s17 = ssub.s32 %s11, 2
      %s24 = sadd.s32 1, %s19
      %p25 = scmp.ge.s32.totalorder %s24, 1
      %s26 = scalar_select %p25, 0, %s24
      %s27 = sadd.s32 1, %s18
      %s28 = scalar_select %p25, %s27, %s18
      %p29 = scmp.ge.s32.totalorder %s28, 2
      %s30 = scalar_select %p29, 0, %s28
      %s31 = ssub.s32 %s18, %s30
      %s32 = ssub.s32 %s19, %s26
      %s33 = sor.u32 %s31, %s32
      %p34 = scmp.eq.s32.totalorder %s33, 0
      %s36 = sadd.s32 %s35, 1
      %s37 = scalar_select %p34, %s35, %s36
      %p40 = pneg %p34
      %p41 = scmp.eq.s32.totalorder %s11, 1
      %p42 = por %p40, %p41
      %p43 = scmp.ne.s32.totalorder %s35, %s38
      %p44 = scmp.eq.s32.totalorder %s11, 0
      %p45 = por %p43, %p44
      %p46 = scmp.ne.s32.totalorder %s35, %s38
      %p47 = scmp.eq.s32.totalorder %s16, 1
      %p48 = por %p46, %p47
      %p49 = scmp.ne.s32.totalorder %s38, %s39
      %p50 = scmp.eq.s32.totalorder %s16, 0
      %p51 = por %p49, %p50
      %p52 = scmp.ne.s32.totalorder %s38, %s39
      %p53 = scmp.eq.s32.totalorder %s17, 1
      %p54 = por %p52, %p53
      %p56 = scmp.ne.s32.totalorder %s39, %s55
      %p57 = scmp.eq.s32.totalorder %s17, 0
      %p58 = por %p56, %p57
      %s59 = ssub.s32 %s18, %s30
      %s60 = ssub.s32 %s19, %s26
      %s61 = sor.u32 %s59, %s60
      %p62 = scmp.eq.s32.totalorder %s61, 0
      %s64 = sadd.s32 %s63, 1
      %s65 = scalar_select %p62, %s63, %s64
      %p68 = pneg %p62
      %p69 = scmp.eq.s32.totalorder %s11, 1
      %p70 = por %p68, %p69
      %p71 = scmp.ne.s32.totalorder %s63, %s66
      %p72 = scmp.eq.s32.totalorder %s11, 0
      %p73 = por %p71, %p72
      %p74 = scmp.ne.s32.totalorder %s63, %s66
      %p75 = scmp.eq.s32.totalorder %s16, 1
      %p76 = por %p74, %p75
      %p77 = scmp.ne.s32.totalorder %s66, %s67
      %p78 = scmp.eq.s32.totalorder %s16, 0
      %p79 = por %p77, %p78
      %p80 = scmp.ne.s32.totalorder %s66, %s67
      %p81 = scmp.eq.s32.totalorder %s17, 1
      %p82 = por %p80, %p81
      %p84 = scmp.ne.s32.totalorder %s67, %s83
      %p85 = scmp.eq.s32.totalorder %s17, 0
      %p86 = por %p84, %p85
      %s87 = ssub.s32 %s18, %s30
      %p88 = scmp.eq.s32.totalorder %s87, 0
      %s90 = sadd.s32 %s89, 1
      %s91 = scalar_select %p88, %s89, %s90
      %p94 = pneg %p88
      %p95 = scmp.eq.s32.totalorder %s11, 1
      %p96 = por %p94, %p95
      %p97 = scmp.ne.s32.totalorder %s89, %s92
      %p98 = scmp.eq.s32.totalorder %s11, 0
      %p99 = por %p97, %p98
      %p100 = scmp.ne.s32.totalorder %s89, %s92
      %p101 = scmp.eq.s32.totalorder %s16, 1
      %p102 = por %p100, %p101
      %p103 = scmp.ne.s32.totalorder %s92, %s93
      %p104 = scmp.eq.s32.totalorder %s16, 0
      %p105 = por %p103, %p104
      %p106 = scmp.ne.s32.totalorder %s92, %s93
      %p107 = scmp.eq.s32.totalorder %s17, 1
      %p108 = por %p106, %p107
      %p110 = scmp.ne.s32.totalorder %s93, %s109
      %p111 = scmp.eq.s32.totalorder %s17, 0
      %p112 = por %p110, %p111
      %p113 = scmp.le.s32.totalorder 1, %s11
      %p114 = scmp.lt.s32.totalorder %s11, 3
      %p115 = pnand %p113, %p114
      %p116 = pneg %p115
      // Predicated region
      $region9: #{tpu_custom_call.1} parent=5 // pred_check
        _
      $region10: #{tpu_custom_call.1} parent=5 // pred_check_branch
        %118 = sbr.rel (%p115) target = $region12
      $region11: #{tpu_custom_call.1} parent=5 // pred_region
        %s119 = ssub.s32 %s11, 1
      $region12: #{tpu_custom_call.1} parent=5 // pred_fallthru
        _
      %p120 = scmp.lt.s32.totalorder %s11, 2
      // Predicated region
      $region13: #{tpu_custom_call.1} parent=5 // pred_check
        %p121 = pneg %p120
      $region14: #{tpu_custom_call.1} parent=5 // pred_check_branch
        %123 = sbr.rel (%p121) target = $region16
      $region15: #{tpu_custom_call.1} parent=5 // pred_region
        // Predicated region
        $region17: #{tpu_custom_call.1} parent=15 // pred_check
          %p124 = pneg %p45
        $region18: #{tpu_custom_call.1} parent=15 // pred_check_branch
          %126 = sbr.rel (%p124) target = $region20
        $region19: #{tpu_custom_call.1} parent=15 // pred_region
          %s127 = smul.u32 4, %s19
          %p128 = scmp.lt.s32.totalorder %s18, 1
          %s129 = scalar_select %p128, %s18, 1
          %p130 = scmp.lt.s32.totalorder %s127, 3
          %s131 = scalar_select %p130, %s127, 3
          %s132 = smul.addr %s131, 2
          %s133 = smul.addr %s129, 8
          %s134 = sadd.s32 %s132, %s133
          %s135 = smul.addr %s134, 8
          %s136 = scalar_lea.vmem %s0, %s135
          %s137 = smul.u32 4, %s19
        $region20: #{tpu_custom_call.1} parent=15 // pred_fallthru
          _
        // Predicated region
        $region21: #{tpu_custom_call.1} parent=15 // pred_check
          %p138 = pneg %p73
        $region22: #{tpu_custom_call.1} parent=15 // pred_check_branch
          %140 = sbr.rel (%p138) target = $region24
        $region23: #{tpu_custom_call.1} parent=15 // pred_region
          %s141 = smul.u32 36, %s19
          %p142 = scmp.lt.s32.totalorder %s18, 1
          %s143 = scalar_select %p142, %s18, 1
          %p144 = scmp.lt.s32.totalorder %s141, 35
          %s145 = scalar_select %p144, %s141, 35
          %s146 = smul.addr %s145, 2
          %s147 = smul.addr %s143, 72
          %s148 = sadd.s32 %s146, %s147
          %s149 = smul.addr %s148, 8
          %s150 = scalar_lea.vmem %s1, %s149
          %s151 = smul.u32 36, %s19
        $region24: #{tpu_custom_call.1} parent=15 // pred_fallthru
          _
      $region16: #{tpu_custom_call.1} parent=5 // pred_fallthru
        _
      %p152 = scmp.le.s32.totalorder 1, %s11
      %p153 = scmp.lt.s32.totalorder %s11, 3
      %p154 = pnand %p152, %p153
      %p155 = pneg %p154
      // Predicated region
      $region25: #{tpu_custom_call.1} parent=5 // pred_check
        _
      $region26: #{tpu_custom_call.1} parent=5 // pred_check_branch
        %157 = sbr.rel (%p154) target = $region28
      $region27: #{tpu_custom_call.1} parent=5 // pred_region
        %s158 = ssub.s32 %s11, 1
        %s159 = smul.u32 4, %s21
        %p160 = scmp.lt.s32.totalorder %s20, 1
        %s161 = scalar_select %p160, %s20, 1
        %p162 = scmp.lt.s32.totalorder %s159, 3
        %s163 = scalar_select %p162, %s159, 3
        %s164 = smul.addr %s163, 2
        %s165 = smul.addr %s161, 8
        %s166 = sadd.s32 %s164, %s165
        %s167 = smul.addr %s166, 8
        %s168 = scalar_lea.vmem %s0, %s167
        %p169 = pneg %p51
        %p170 = pneg %p48
        %s171 = smul.u32 36, %s21
        %p172 = scmp.lt.s32.totalorder %s20, 1
        %s173 = scalar_select %p172, %s20, 1
        %p174 = scmp.lt.s32.totalorder %s171, 35
        %s175 = scalar_select %p174, %s171, 35
        %s176 = smul.addr %s175, 2
        %s177 = smul.addr %s173, 72
        %s178 = sadd.s32 %s176, %s177
        %s179 = smul.addr %s178, 8
        %s180 = scalar_lea.vmem %s1, %s179
        %p181 = pneg %p79
        %p182 = pneg %p76
        %p183 = pneg %p105
        %p184 = pneg %p102
        %s185 = sand.u32 %s92, 1
        %s186 = scalar_lea.sflag [#allocation5], %s185
        %s187 = sand.u32 %s92, 1
        %s188 = smul.addr %s187, 16
        %s189 = scalar_lea.vmem [#allocation4], %s188
        %s190 = smul.u32 4, %s21
        %p191 = scmp.lt.s32.totalorder %s20, 1
        %s192 = scalar_select %p191, %s20, 1
        %p193 = scmp.lt.s32.totalorder %s190, 3
        %s194 = scalar_select %p193, %s190, 3
        %s195 = smul.addr %s194, 2
        %s196 = smul.addr %s192, 8
        %s197 = sadd.s32 %s195, %s196
        %s198 = smul.addr %s197, 8
        %s199 = scalar_lea.vmem %s0, %s198
        %s200 = smul.u32 4, %s21
        %s201 = smul.u32 36, %s21
        %p202 = scmp.lt.s32.totalorder %s20, 1
        %s203 = scalar_select %p202, %s20, 1
        %p204 = scmp.lt.s32.totalorder %s201, 35
        %s205 = scalar_select %p204, %s201, 35
        %s206 = smul.addr %s205, 2
        %s207 = smul.addr %s203, 72
        %s208 = sadd.s32 %s206, %s207
        %s209 = smul.addr %s208, 8
        %s210 = scalar_lea.vmem %s1, %s209
        %s211 = smul.u32 36, %s21
        %212 = vst [vmem:[#allocation3] sm:$0xff] 0.0
        %vm213 = vcmask 138240
        %214 = vst.msk [vmem:[#allocation3 + $0x8] sm:$0xff] %vm213, 0.0
        %215 = vst [vmem:[#allocation3 + $0x10] sm:$0xff] 0.0
        %216 = vst.msk [vmem:[#allocation3 + $0x18] sm:$0xff] %vm213, 0.0
        %217 = vst [vmem:[#allocation3 + $0x20] sm:$0xff] 0.0
        %218 = vst.msk [vmem:[#allocation3 + $0x28] sm:$0xff] %vm213, 0.0
        %219 = vst [vmem:[#allocation3 + $0x30] sm:$0x3] 0.0
        %vm220 = vcmask 132096
        %221 = vst.msk [vmem:[#allocation3 + $0x38] sm:$0x3] %vm220, 0.0
        %v222 = vld [vmem:[%s199] sm:$0xff]
        %v223 = vld [vmem:[%s199 + $0x8] sm:$0xff]
        %vm224 = vcmask 130048
        %225 = vst.msk [vmem:[#allocation3 + $0x18] sm:$0xff] %vm224, %v222
        %226 = vst.msk [vmem:[#allocation3 + $0x28] sm:$0xff] %vm224, %v223
        %v227 = vld [vmem:[#allocation3] sm:$0x80]
        %v228 = vld [vmem:[#allocation3 + $0x8] sm:$0x80]
        %v229 = vld [vmem:[#allocation3 + $0x10] sm:$0xff]
        %v230 = vld [vmem:[#allocation3 + $0x18] sm:$0xff]
        %v231 = vld [vmem:[#allocation3 + $0x20] sm:$0x7f]
        %v232 = vld [vmem:[#allocation3 + $0x28] sm:$0x7f]
        %v233 = vld [vmem:[%s210] sm:$0xff]
        %v234 = vld [vmem:[%s210 + $0x8] sm:$0xff]
        %vm237 = vcmask 1046528
        %v238 = vrot.slane %v233, 1
        %v239 = vrot.slane %v234, 1
        %v240 = vsel %vm237, %v238, %v239
        %241 = vrot.lane.b32.xlu0 %v238, 127
        %v242 = vpop.permute.xlu0 %241
        %243 = vrot.lane.b32.xlu0 %v240, 127
        %v244 = vpop.permute.xlu0 %243
        %245 = vrot.lane.b32.xlu0 %v239, 127
        %v246 = vpop.permute.xlu0 %245
        %v250 = vmul.f32 %v227, %v242
        %v251 = vmul.f32 %v228, %v242
        %v252 = vmul.f32 %v229, %v244
        %v253 = vmul.f32 %v230, %v244
        %v254 = vmul.f32 %v231, %v246
        %v255 = vmul.f32 %v232, %v246
        %v256 = vadd.f32 %v250, 0.0
        %v257 = vadd.f32 %v251, 0.0
        %v258 = vadd.f32 %v252, 0.0
        %v259 = vadd.f32 %v253, 0.0
        %v260 = vadd.f32 %v254, 0.0
        %v261 = vadd.f32 %v255, 0.0
        %v262 = vld [vmem:[#allocation3 + $0x20] sm:$0xff]
        %v263 = vld [vmem:[#allocation3 + $0x28] sm:$0xff]
        %s264 = scalar_lea.vmem %s210, 48
        %v265 = vld [vmem:[%s264] sm:$0xff]
        %v266 = vld [vmem:[%s264 + $0x8] sm:$0xff]
        %269 = vrot.lane.b32.xlu0 %v265, 127
        %v270 = vpop.permute.xlu0 %269
        %271 = vrot.lane.b32.xlu0 %v266, 127
        %v272 = vpop.permute.xlu0 %271
        %v275 = vmul.f32 %v229, %v270
        %v276 = vmul.f32 %v230, %v270
        %v277 = vmul.f32 %v262, %v272
        %v278 = vmul.f32 %v263, %v272
        %v283 = vrot.slane %v275, 1
        %v284 = vrot.slane %v276, 1
        %v285 = vrot.slane %v277, 1
        %v286 = vsel %vm237, %v283, %v285
        %v287 = vrot.slane %v278, 1
        %v288 = vsel %vm237, %v284, %v287
        %v295 = vadd.f32 %v256, %v283
        %v296 = vadd.f32 %v257, %v284
        %v297 = vadd.f32 %v258, %v286
        %v298 = vadd.f32 %v259, %v288
        %v299 = vadd.f32 %v260, %v285
        %v300 = vadd.f32 %v261, %v287
        %v301 = vld [vmem:[#allocation3 + $0x10] sm:$0xfe]
        %v302 = vld [vmem:[#allocation3 + $0x18] sm:$0xfe]
        %v303 = vld [vmem:[#allocation3 + $0x30] sm:$0x1]
        %v304 = vld [vmem:[#allocation3 + $0x38] sm:$0x1]
        %s305 = scalar_lea.vmem %s210, 96
        %v306 = vld [vmem:[%s305] sm:$0xff]
        %v307 = vld [vmem:[%s305 + $0x8] sm:$0xff]
        %vm310 = vcmask 1040384
        %v311 = vrot.slane %v306, 7
        %v312 = vrot.slane %v307, 7
        %v313 = vsel %vm310, %v311, %v312
        %314 = vrot.lane.b32.xlu0 %v311, 127
        %v315 = vpop.permute.xlu0 %314
        %316 = vrot.lane.b32.xlu0 %v313, 127
        %v317 = vpop.permute.xlu0 %316
        %318 = vrot.lane.b32.xlu0 %v312, 127
        %v319 = vpop.permute.xlu0 %318
        %v323 = vmul.f32 %v301, %v315
        %v324 = vmul.f32 %v302, %v315
        %v325 = vmul.f32 %v262, %v317
        %v326 = vmul.f32 %v263, %v317
        %v327 = vmul.f32 %v303, %v319
        %v328 = vmul.f32 %v304, %v319
        %vm335 = vcmask 1045504
        %v336 = vrot.slane %v323, 2
        %v337 = vrot.slane %v324, 2
        %v338 = vrot.slane %v325, 2
        %v339 = vsel %vm335, %v336, %v338
        %v340 = vrot.slane %v326, 2
        %v341 = vsel %vm335, %v337, %v340
        %v342 = vrot.slane %v327, 2
        %v343 = vsel %vm335, %v338, %v342
        %v344 = vrot.slane %v328, 2
        %v345 = vsel %vm335, %v340, %v344
        %v352 = vadd.f32 %v295, %v336
        %v353 = vadd.f32 %v296, %v337
        %v354 = vadd.f32 %v297, %v339
        %v355 = vadd.f32 %v298, %v341
        %v356 = vadd.f32 %v299, %v343
        %v357 = vadd.f32 %v300, %v345
        %s358 = scalar_lea.vmem %s210, 16
        %v359 = vld [vmem:[%s358] sm:$0xff]
        %v360 = vld [vmem:[%s358 + $0x8] sm:$0xff]
        %v363 = vrot.slane %v359, 1
        %v364 = vrot.slane %v360, 1
        %v365 = vsel %vm237, %v363, %v364
        %v369 = vmul.f32 %v228, %v363
        %v370 = vmul.f32 %v230, %v365
        %v371 = vmul.f32 %v232, %v364
        %375 = vrot.lane.b32.xlu0 %v369, 127
        %v376 = vpop.permute.xlu0 %375
        %377 = vrot.lane.b32.xlu0 %v370, 127
        %v378 = vpop.permute.xlu0 %377
        %379 = vrot.lane.b32.xlu0 %v371, 127
        %v380 = vpop.permute.xlu0 %379
        %v384 = vadd.f32 %v352, %v376
        %v385 = vadd.f32 %v353, %v376
        %v386 = vadd.f32 %v354, %v378
        %v387 = vadd.f32 %v355, %v378
        %v388 = vadd.f32 %v356, %v380
        %v389 = vadd.f32 %v357, %v380
        %s390 = scalar_lea.vmem %s210, 64
        %v391 = vld [vmem:[%s390] sm:$0xff]
        %v392 = vld [vmem:[%s390 + $0x8] sm:$0xff]
        %v393 = vmul.f32 %v230, %v391
        %v394 = vmul.f32 %v263, %v392
        %v397 = vrot.slane %v393, 1
        %v398 = vrot.slane %v394, 1
        %v399 = vsel %vm237, %v397, %v398
        %400 = vrot.lane.b32.xlu0 %v397, 127
        %v401 = vpop.permute.xlu0 %400
        %402 = vrot.lane.b32.xlu0 %v399, 127
        %v403 = vpop.permute.xlu0 %402
        %404 = vrot.lane.b32.xlu0 %v398, 127
        %v405 = vpop.permute.xlu0 %404
        %v409 = vadd.f32 %v384, %v401
        %v410 = vadd.f32 %v385, %v401
        %v411 = vadd.f32 %v386, %v403
        %v412 = vadd.f32 %v387, %v403
        %v413 = vadd.f32 %v388, %v405
        %v414 = vadd.f32 %v389, %v405
        %s415 = scalar_lea.vmem %s210, 112
        %v416 = vld [vmem:[%s415] sm:$0xff]
        %v417 = vld [vmem:[%s415 + $0x8] sm:$0xff]
        %v420 = vrot.slane %v416, 7
        %v421 = vrot.slane %v417, 7
        %v422 = vsel %vm310, %v420, %v421
        %v426 = vmul.f32 %v302, %v420
        %v427 = vmul.f32 %v263, %v422
        %v428 = vmul.f32 %v304, %v421
        %v432 = vrot.slane %v426, 2
        %v433 = vrot.slane %v427, 2
        %v434 = vsel %vm335, %v432, %v433
        %v435 = vrot.slane %v428, 2
        %v436 = vsel %vm335, %v433, %v435
        %437 = vrot.lane.b32.xlu0 %v432, 127
        %v438 = vpop.permute.xlu0 %437
        %439 = vrot.lane.b32.xlu0 %v434, 127
        %v440 = vpop.permute.xlu0 %439
        %441 = vrot.lane.b32.xlu0 %v436, 127
        %v442 = vpop.permute.xlu0 %441
        %v446 = vadd.f32 %v409, %v438
        %v447 = vadd.f32 %v410, %v438
        %v448 = vadd.f32 %v411, %v440
        %v449 = vadd.f32 %v412, %v440
        %v450 = vadd.f32 %v413, %v442
        %v451 = vadd.f32 %v414, %v442
        %s452 = scalar_lea.vmem %s210, 32
        %v453 = vld [vmem:[%s452] sm:$0xff]
        %v454 = vld [vmem:[%s452 + $0x8] sm:$0xff]
        %v457 = vrot.slane %v453, 1
        %v458 = vrot.slane %v454, 1
        %v459 = vsel %vm237, %v457, %v458
        %460 = vrot.lane.b32.xlu0 %v457, 1
        %v461 = vpop.permute.xlu0 %460
        %462 = vrot.lane.b32.xlu0 %v459, 1
        %v463 = vpop.permute.xlu0 %462
        %464 = vrot.lane.b32.xlu0 %v458, 1
        %v465 = vpop.permute.xlu0 %464
        %v469 = vmul.f32 %v228, %v461
        %v470 = vmul.f32 %v230, %v463
        %v471 = vmul.f32 %v232, %v465
        %475 = vrot.lane.b32.xlu0 %v469, 126
        %v476 = vpop.permute.xlu0 %475
        %477 = vrot.lane.b32.xlu0 %v470, 126
        %v478 = vpop.permute.xlu0 %477
        %479 = vrot.lane.b32.xlu0 %v471, 126
        %v480 = vpop.permute.xlu0 %479
        %v484 = vadd.f32 %v446, %v476
        %v485 = vadd.f32 %v447, %v476
        %v486 = vadd.f32 %v448, %v478
        %v487 = vadd.f32 %v449, %v478
        %v488 = vadd.f32 %v450, %v480
        %v489 = vadd.f32 %v451, %v480
        %s490 = scalar_lea.vmem %s210, 80
        %v491 = vld [vmem:[%s490] sm:$0xff]
        %v492 = vld [vmem:[%s490 + $0x8] sm:$0xff]
        %495 = vrot.lane.b32.xlu0 %v491, 1
        %v496 = vpop.permute.xlu0 %495
        %497 = vrot.lane.b32.xlu0 %v492, 1
        %v498 = vpop.permute.xlu0 %497
        %v501 = vmul.f32 %v230, %v496
        %v502 = vmul.f32 %v263, %v498
        %v505 = vrot.slane %v501, 1
        %v506 = vrot.slane %v502, 1
        %v507 = vsel %vm237, %v505, %v506
        %508 = vrot.lane.b32.xlu0 %v505, 126
        %v509 = vpop.permute.xlu0 %508
        %510 = vrot.lane.b32.xlu0 %v507, 126
        %v511 = vpop.permute.xlu0 %510
        %512 = vrot.lane.b32.xlu0 %v506, 126
        %v513 = vpop.permute.xlu0 %512
        %v517 = vadd.f32 %v484, %v509
        %v518 = vadd.f32 %v485, %v509
        %v519 = vadd.f32 %v486, %v511
        %v520 = vadd.f32 %v487, %v511
        %v521 = vadd.f32 %v488, %v513
        %v522 = vadd.f32 %v489, %v513
        %s523 = scalar_lea.vmem %s210, 128
        %v524 = vld [vmem:[%s523] sm:$0xff]
        %v525 = vld [vmem:[%s523 + $0x8] sm:$0xff]
        %v528 = vrot.slane %v524, 7
        %v529 = vrot.slane %v525, 7
        %v530 = vsel %vm310, %v528, %v529
        %531 = vrot.lane.b32.xlu0 %v528, 1
        %v532 = vpop.permute.xlu0 %531
        %533 = vrot.lane.b32.xlu0 %v530, 1
        %v534 = vpop.permute.xlu0 %533
        %535 = vrot.lane.b32.xlu0 %v529, 1
        %v536 = vpop.permute.xlu0 %535
        %v540 = vmul.f32 %v302, %v532
        %v541 = vmul.f32 %v263, %v534
        %v542 = vmul.f32 %v304, %v536
        %v546 = vrot.slane %v540, 2
        %v547 = vrot.slane %v541, 2
        %v548 = vsel %vm335, %v546, %v547
        %v549 = vrot.slane %v542, 2
        %v550 = vsel %vm335, %v547, %v549
        %551 = vrot.lane.b32.xlu0 %v546, 126
        %v552 = vpop.permute.xlu0 %551
        %553 = vrot.lane.b32.xlu0 %v548, 126
        %v554 = vpop.permute.xlu0 %553
        %555 = vrot.lane.b32.xlu0 %v550, 126
        %v556 = vpop.permute.xlu0 %555
        %v560 = vadd.f32 %v517, %v552
        %v561 = vadd.f32 %v518, %v552
        %v562 = vadd.f32 %v519, %v554
        %v563 = vadd.f32 %v520, %v554
        %v564 = vadd.f32 %v521, %v556
        %v565 = vadd.f32 %v522, %v556
        %s566 = scalar_lea.vmem %s199, 16
        %v567 = vld [vmem:[%s566] sm:$0xff]
        %v568 = vld [vmem:[%s566 + $0x8] sm:$0xff]
        %569 = vst.msk [vmem:[#allocation3 + $0x18] sm:$0xff] %vm224, %v567
        %570 = vst.msk [vmem:[#allocation3 + $0x28] sm:$0xff] %vm224, %v568
        %v571 = vld [vmem:[#allocation3] sm:$0x80]
        %v572 = vld [vmem:[#allocation3 + $0x8] sm:$0x80]
        %v573 = vld [vmem:[#allocation3 + $0x10] sm:$0xff]
        %v574 = vld [vmem:[#allocation3 + $0x18] sm:$0xff]
        %v575 = vld [vmem:[#allocation3 + $0x20] sm:$0x7f]
        %v576 = vld [vmem:[#allocation3 + $0x28] sm:$0x7f]
        %s577 = scalar_lea.vmem %s210, 144
        %v578 = vld [vmem:[%s577] sm:$0xff]
        %v579 = vld [vmem:[%s577 + $0x8] sm:$0xff]
        %v582 = vrot.slane %v578, 1
        %v583 = vrot.slane %v579, 1
        %v584 = vsel %vm237, %v582, %v583
        %585 = vrot.lane.b32.xlu0 %v582, 127
        %v586 = vpop.permute.xlu0 %585
        %587 = vrot.lane.b32.xlu0 %v584, 127
        %v588 = vpop.permute.xlu0 %587
        %589 = vrot.lane.b32.xlu0 %v583, 127
        %v590 = vpop.permute.xlu0 %589
        %v594 = vmul.f32 %v571, %v586
        %v595 = vmul.f32 %v572, %v586
        %v596 = vmul.f32 %v573, %v588
        %v597 = vmul.f32 %v574, %v588
        %v598 = vmul.f32 %v575, %v590
        %v599 = vmul.f32 %v576, %v590
        %v600 = vadd.f32 %v560, %v594
        %v601 = vadd.f32 %v561, %v595
        %v602 = vadd.f32 %v562, %v596
        %v603 = vadd.f32 %v563, %v597
        %v604 = vadd.f32 %v564, %v598
        %v605 = vadd.f32 %v565, %v599
        %v606 = vld [vmem:[#allocation3 + $0x20] sm:$0xff]
        %v607 = vld [vmem:[#allocation3 + $0x28] sm:$0xff]
        %s608 = scalar_lea.vmem %s210, 192
        %v609 = vld [vmem:[%s608] sm:$0xff]
        %v610 = vld [vmem:[%s608 + $0x8] sm:$0xff]
        %613 = vrot.lane.b32.xlu0 %v609, 127
        %v614 = vpop.permute.xlu0 %613
        %615 = vrot.lane.b32.xlu0 %v610, 127
        %v616 = vpop.permute.xlu0 %615
        %v619 = vmul.f32 %v573, %v614
        %v620 = vmul.f32 %v574, %v614
        %v621 = vmul.f32 %v606, %v616
        %v622 = vmul.f32 %v607, %v616
        %v627 = vrot.slane %v619, 1
        %v628 = vrot.slane %v620, 1
        %v629 = vrot.slane %v621, 1
        %v630 = vsel %vm237, %v627, %v629
        %v631 = vrot.slane %v622, 1
        %v632 = vsel %vm237, %v628, %v631
        %v639 = vadd.f32 %v600, %v627
        %v640 = vadd.f32 %v601, %v628
        %v641 = vadd.f32 %v602, %v630
        %v642 = vadd.f32 %v603, %v632
        %v643 = vadd.f32 %v604, %v629
        %v644 = vadd.f32 %v605, %v631
        %v645 = vld [vmem:[#allocation3 + $0x10] sm:$0xfe]
        %v646 = vld [vmem:[#allocation3 + $0x18] sm:$0xfe]
        %v647 = vld [vmem:[#allocation3 + $0x30] sm:$0x1]
        %v648 = vld [vmem:[#allocation3 + $0x38] sm:$0x1]
        %s649 = scalar_lea.vmem %s210, 240
        %v650 = vld [vmem:[%s649] sm:$0xff]
        %v651 = vld [vmem:[%s649 + $0x8] sm:$0xff]
        %v654 = vrot.slane %v650, 7
        %v655 = vrot.slane %v651, 7
        %v656 = vsel %vm310, %v654, %v655
        %657 = vrot.lane.b32.xlu0 %v654, 127
        %v658 = vpop.permute.xlu0 %657
        %659 = vrot.lane.b32.xlu0 %v656, 127
        %v660 = vpop.permute.xlu0 %659
        %661 = vrot.lane.b32.xlu0 %v655, 127
        %v662 = vpop.permute.xlu0 %661
        %v666 = vmul.f32 %v645, %v658
        %v667 = vmul.f32 %v646, %v658
        %v668 = vmul.f32 %v606, %v660
        %v669 = vmul.f32 %v607, %v660
        %v670 = vmul.f32 %v647, %v662
        %v671 = vmul.f32 %v648, %v662
        %v678 = vrot.slane %v666, 2
        %v679 = vrot.slane %v667, 2
        %v680 = vrot.slane %v668, 2
        %v681 = vsel %vm335, %v678, %v680
        %v682 = vrot.slane %v669, 2
        %v683 = vsel %vm335, %v679, %v682
        %v684 = vrot.slane %v670, 2
        %v685 = vsel %vm335, %v680, %v684
        %v686 = vrot.slane %v671, 2
        %v687 = vsel %vm335, %v682, %v686
        %v694 = vadd.f32 %v639, %v678
        %v695 = vadd.f32 %v640, %v679
        %v696 = vadd.f32 %v641, %v681
        %v697 = vadd.f32 %v642, %v683
        %v698 = vadd.f32 %v643, %v685
        %v699 = vadd.f32 %v644, %v687
        %s700 = scalar_lea.vmem %s210, 160
        %v701 = vld [vmem:[%s700] sm:$0xff]
        %v702 = vld [vmem:[%s700 + $0x8] sm:$0xff]
        %v705 = vrot.slane %v701, 1
        %v706 = vrot.slane %v702, 1
        %v707 = vsel %vm237, %v705, %v706
        %v711 = vmul.f32 %v572, %v705
        %v712 = vmul.f32 %v574, %v707
        %v713 = vmul.f32 %v576, %v706
        %717 = vrot.lane.b32.xlu0 %v711, 127
        %v718 = vpop.permute.xlu0 %717
        %719 = vrot.lane.b32.xlu0 %v712, 127
        %v720 = vpop.permute.xlu0 %719
        %721 = vrot.lane.b32.xlu0 %v713, 127
        %v722 = vpop.permute.xlu0 %721
        %v726 = vadd.f32 %v694, %v718
        %v727 = vadd.f32 %v695, %v718
        %v728 = vadd.f32 %v696, %v720
        %v729 = vadd.f32 %v697, %v720
        %v730 = vadd.f32 %v698, %v722
        %v731 = vadd.f32 %v699, %v722
        %s732 = scalar_lea.vmem %s210, 208
        %v733 = vld [vmem:[%s732] sm:$0xff]
        %v734 = vld [vmem:[%s732 + $0x8] sm:$0xff]
        %v735 = vmul.f32 %v574, %v733
        %v736 = vmul.f32 %v607, %v734
        %v739 = vrot.slane %v735, 1
        %v740 = vrot.slane %v736, 1
        %v741 = vsel %vm237, %v739, %v740
        %742 = vrot.lane.b32.xlu0 %v739, 127
        %v743 = vpop.permute.xlu0 %742
        %744 = vrot.lane.b32.xlu0 %v741, 127
        %v745 = vpop.permute.xlu0 %744
        %746 = vrot.lane.b32.xlu0 %v740, 127
        %v747 = vpop.permute.xlu0 %746
        %v751 = vadd.f32 %v726, %v743
        %v752 = vadd.f32 %v727, %v743
        %v753 = vadd.f32 %v728, %v745
        %v754 = vadd.f32 %v729, %v745
        %v755 = vadd.f32 %v730, %v747
        %v756 = vadd.f32 %v731, %v747
        %s757 = scalar_lea.vmem %s210, 256
        %v758 = vld [vmem:[%s757] sm:$0xff]
        %v759 = vld [vmem:[%s757 + $0x8] sm:$0xff]
        %v762 = vrot.slane %v758, 7
        %v763 = vrot.slane %v759, 7
        %v764 = vsel %vm310, %v762, %v763
        %v768 = vmul.f32 %v646, %v762
        %v769 = vmul.f32 %v607, %v764
        %v770 = vmul.f32 %v648, %v763
        %v774 = vrot.slane %v768, 2
        %v775 = vrot.slane %v769, 2
        %v776 = vsel %vm335, %v774, %v775
        %v777 = vrot.slane %v770, 2
        %v778 = vsel %vm335, %v775, %v777
        %779 = vrot.lane.b32.xlu0 %v774, 127
        %v780 = vpop.permute.xlu0 %779
        %781 = vrot.lane.b32.xlu0 %v776, 127
        %v782 = vpop.permute.xlu0 %781
        %783 = vrot.lane.b32.xlu0 %v778, 127
        %v784 = vpop.permute.xlu0 %783
        %v788 = vadd.f32 %v751, %v780
        %v789 = vadd.f32 %v752, %v780
        %v790 = vadd.f32 %v753, %v782
        %v791 = vadd.f32 %v754, %v782
        %v792 = vadd.f32 %v755, %v784
        %v793 = vadd.f32 %v756, %v784
        %s794 = scalar_lea.vmem %s210, 176
        %v795 = vld [vmem:[%s794] sm:$0xff]
        %v796 = vld [vmem:[%s794 + $0x8] sm:$0xff]
        %v799 = vrot.slane %v795, 1
        %v800 = vrot.slane %v796, 1
        %v801 = vsel %vm237, %v799, %v800
        %802 = vrot.lane.b32.xlu0 %v799, 1
        %v803 = vpop.permute.xlu0 %802
        %804 = vrot.lane.b32.xlu0 %v801, 1
        %v805 = vpop.permute.xlu0 %804
        %806 = vrot.lane.b32.xlu0 %v800, 1
        %v807 = vpop.permute.xlu0 %806
        %v811 = vmul.f32 %v572, %v803
        %v812 = vmul.f32 %v574, %v805
        %v813 = vmul.f32 %v576, %v807
        %817 = vrot.lane.b32.xlu0 %v811, 126
        %v818 = vpop.permute.xlu0 %817
        %819 = vrot.lane.b32.xlu0 %v812, 126
        %v820 = vpop.permute.xlu0 %819
        %821 = vrot.lane.b32.xlu0 %v813, 126
        %v822 = vpop.permute.xlu0 %821
        %v826 = vadd.f32 %v788, %v818
        %v827 = vadd.f32 %v789, %v818
        %v828 = vadd.f32 %v790, %v820
        %v829 = vadd.f32 %v791, %v820
        %v830 = vadd.f32 %v792, %v822
        %v831 = vadd.f32 %v793, %v822
        %s832 = scalar_lea.vmem %s210, 224
        %v833 = vld [vmem:[%s832] sm:$0xff]
        %v834 = vld [vmem:[%s832 + $0x8] sm:$0xff]
        %837 = vrot.lane.b32.xlu0 %v833, 1
        %v838 = vpop.permute.xlu0 %837
        %839 = vrot.lane.b32.xlu0 %v834, 1
        %v840 = vpop.permute.xlu0 %839
        %v843 = vmul.f32 %v574, %v838
        %v844 = vmul.f32 %v607, %v840
        %v847 = vrot.slane %v843, 1
        %v848 = vrot.slane %v844, 1
        %v849 = vsel %vm237, %v847, %v848
        %850 = vrot.lane.b32.xlu0 %v847, 126
        %v851 = vpop.permute.xlu0 %850
        %852 = vrot.lane.b32.xlu0 %v849, 126
        %v853 = vpop.permute.xlu0 %852
        %854 = vrot.lane.b32.xlu0 %v848, 126
        %v855 = vpop.permute.xlu0 %854
        %v859 = vadd.f32 %v826, %v851
        %v860 = vadd.f32 %v827, %v851
        %v861 = vadd.f32 %v828, %v853
        %v862 = vadd.f32 %v829, %v853
        %v863 = vadd.f32 %v830, %v855
        %v864 = vadd.f32 %v831, %v855
        %s865 = scalar_lea.vmem %s210, 272
        %v866 = vld [vmem:[%s865] sm:$0xff]
        %v867 = vld [vmem:[%s865 + $0x8] sm:$0xff]
        %v870 = vrot.slane %v866, 7
        %v871 = vrot.slane %v867, 7
        %v872 = vsel %vm310, %v870, %v871
        %873 = vrot.lane.b32.xlu0 %v870, 1
        %v874 = vpop.permute.xlu0 %873
        %875 = vrot.lane.b32.xlu0 %v872, 1
        %v876 = vpop.permute.xlu0 %875
        %877 = vrot.lane.b32.xlu0 %v871, 1
        %v878 = vpop.permute.xlu0 %877
        %v882 = vmul.f32 %v646, %v874
        %v883 = vmul.f32 %v607, %v876
        %v884 = vmul.f32 %v648, %v878
        %v888 = vrot.slane %v882, 2
        %v889 = vrot.slane %v883, 2
        %v890 = vsel %vm335, %v888, %v889
        %v891 = vrot.slane %v884, 2
        %v892 = vsel %vm335, %v889, %v891
        %893 = vrot.lane.b32.xlu0 %v888, 126
        %v894 = vpop.permute.xlu0 %893
        %895 = vrot.lane.b32.xlu0 %v890, 126
        %v896 = vpop.permute.xlu0 %895
        %897 = vrot.lane.b32.xlu0 %v892, 126
        %v898 = vpop.permute.xlu0 %897
        %v902 = vadd.f32 %v859, %v894
        %v903 = vadd.f32 %v860, %v894
        %v904 = vadd.f32 %v861, %v896
        %v905 = vadd.f32 %v862, %v896
        %v906 = vadd.f32 %v863, %v898
        %v907 = vadd.f32 %v864, %v898
        %s908 = scalar_lea.vmem %s199, 32
        %v909 = vld [vmem:[%s908] sm:$0xff]
        %v910 = vld [vmem:[%s908 + $0x8] sm:$0xff]
        %911 = vst.msk [vmem:[#allocation3 + $0x18] sm:$0xff] %vm224, %v909
        %912 = vst.msk [vmem:[#allocation3 + $0x28] sm:$0xff] %vm224, %v910
        %v913 = vld [vmem:[#allocation3] sm:$0x80]
        %v914 = vld [vmem:[#allocation3 + $0x8] sm:$0x80]
        %v915 = vld [vmem:[#allocation3 + $0x10] sm:$0xff]
        %v916 = vld [vmem:[#allocation3 + $0x18] sm:$0xff]
        %v917 = vld [vmem:[#allocation3 + $0x20] sm:$0x7f]
        %v918 = vld [vmem:[#allocation3 + $0x28] sm:$0x7f]
        %s919 = scalar_lea.vmem %s210, 288
        %v920 = vld [vmem:[%s919] sm:$0xff]
        %v921 = vld [vmem:[%s919 + $0x8] sm:$0xff]
        %v924 = vrot.slane %v920, 1
        %v925 = vrot.slane %v921, 1
        %v926 = vsel %vm237, %v924, %v925
        %927 = vrot.lane.b32.xlu0 %v924, 127
        %v928 = vpop.permute.xlu0 %927
        %929 = vrot.lane.b32.xlu0 %v926, 127
        %v930 = vpop.permute.xlu0 %929
        %931 = vrot.lane.b32.xlu0 %v925, 127
        %v932 = vpop.permute.xlu0 %931
        %v936 = vmul.f32 %v913, %v928
        %v937 = vmul.f32 %v914, %v928
        %v938 = vmul.f32 %v915, %v930
        %v939 = vmul.f32 %v916, %v930
        %v940 = vmul.f32 %v917, %v932
        %v941 = vmul.f32 %v918, %v932
        %v942 = vadd.f32 %v902, %v936
        %v943 = vadd.f32 %v903, %v937
        %v944 = vadd.f32 %v904, %v938
        %v945 = vadd.f32 %v905, %v939
        %v946 = vadd.f32 %v906, %v940
        %v947 = vadd.f32 %v907, %v941
        %v948 = vld [vmem:[#allocation3 + $0x20] sm:$0xff]
        %v949 = vld [vmem:[#allocation3 + $0x28] sm:$0xff]
        %s950 = scalar_lea.vmem %s210, 336
        %v951 = vld [vmem:[%s950] sm:$0xff]
        %v952 = vld [vmem:[%s950 + $0x8] sm:$0xff]
        %955 = vrot.lane.b32.xlu0 %v951, 127
        %v956 = vpop.permute.xlu0 %955
        %957 = vrot.lane.b32.xlu0 %v952, 127
        %v958 = vpop.permute.xlu0 %957
        %v961 = vmul.f32 %v915, %v956
        %v962 = vmul.f32 %v916, %v956
        %v963 = vmul.f32 %v948, %v958
        %v964 = vmul.f32 %v949, %v958
        %v969 = vrot.slane %v961, 1
        %v970 = vrot.slane %v962, 1
        %v971 = vrot.slane %v963, 1
        %v972 = vsel %vm237, %v969, %v971
        %v973 = vrot.slane %v964, 1
        %v974 = vsel %vm237, %v970, %v973
        %v981 = vadd.f32 %v942, %v969
        %v982 = vadd.f32 %v943, %v970
        %v983 = vadd.f32 %v944, %v972
        %v984 = vadd.f32 %v945, %v974
        %v985 = vadd.f32 %v946, %v971
        %v986 = vadd.f32 %v947, %v973
        %v987 = vld [vmem:[#allocation3 + $0x10] sm:$0xfe]
        %v988 = vld [vmem:[#allocation3 + $0x18] sm:$0xfe]
        %v989 = vld [vmem:[#allocation3 + $0x30] sm:$0x1]
        %v990 = vld [vmem:[#allocation3 + $0x38] sm:$0x1]
        %s991 = scalar_lea.vmem %s210, 384
        %v992 = vld [vmem:[%s991] sm:$0xff]
        %v993 = vld [vmem:[%s991 + $0x8] sm:$0xff]
        %v996 = vrot.slane %v992, 7
        %v997 = vrot.slane %v993, 7
        %v998 = vsel %vm310, %v996, %v997
        %999 = vrot.lane.b32.xlu0 %v996, 127
        %v1000 = vpop.permute.xlu0 %999
        %1001 = vrot.lane.b32.xlu0 %v998, 127
        %v1002 = vpop.permute.xlu0 %1001
        %1003 = vrot.lane.b32.xlu0 %v997, 127
        %v1004 = vpop.permute.xlu0 %1003
        %v1008 = vmul.f32 %v987, %v1000
        %v1009 = vmul.f32 %v988, %v1000
        %v1010 = vmul.f32 %v948, %v1002
        %v1011 = vmul.f32 %v949, %v1002
        %v1012 = vmul.f32 %v989, %v1004
        %v1013 = vmul.f32 %v990, %v1004
        %v1020 = vrot.slane %v1008, 2
        %v1021 = vrot.slane %v1009, 2
        %v1022 = vrot.slane %v1010, 2
        %v1023 = vsel %vm335, %v1020, %v1022
        %v1024 = vrot.slane %v1011, 2
        %v1025 = vsel %vm335, %v1021, %v1024
        %v1026 = vrot.slane %v1012, 2
        %v1027 = vsel %vm335, %v1022, %v1026
        %v1028 = vrot.slane %v1013, 2
        %v1029 = vsel %vm335, %v1024, %v1028
        %v1036 = vadd.f32 %v981, %v1020
        %v1037 = vadd.f32 %v982, %v1021
        %v1038 = vadd.f32 %v983, %v1023
        %v1039 = vadd.f32 %v984, %v1025
        %v1040 = vadd.f32 %v985, %v1027
        %v1041 = vadd.f32 %v986, %v1029
        %s1042 = scalar_lea.vmem %s210, 304
        %v1043 = vld [vmem:[%s1042] sm:$0xff]
        %v1044 = vld [vmem:[%s1042 + $0x8] sm:$0xff]
        %v1047 = vrot.slane %v1043, 1
        %v1048 = vrot.slane %v1044, 1
        %v1049 = vsel %vm237, %v1047, %v1048
        %v1053 = vmul.f32 %v914, %v1047
        %v1054 = vmul.f32 %v916, %v1049
        %v1055 = vmul.f32 %v918, %v1048
        %1059 = vrot.lane.b32.xlu0 %v1053, 127
        %v1060 = vpop.permute.xlu0 %1059
        %1061 = vrot.lane.b32.xlu0 %v1054, 127
        %v1062 = vpop.permute.xlu0 %1061
        %1063 = vrot.lane.b32.xlu0 %v1055, 127
        %v1064 = vpop.permute.xlu0 %1063
        %v1068 = vadd.f32 %v1036, %v1060
        %v1069 = vadd.f32 %v1037, %v1060
        %v1070 = vadd.f32 %v1038, %v1062
        %v1071 = vadd.f32 %v1039, %v1062
        %v1072 = vadd.f32 %v1040, %v1064
        %v1073 = vadd.f32 %v1041, %v1064
        %s1074 = scalar_lea.vmem %s210, 352
        %v1075 = vld [vmem:[%s1074] sm:$0xff]
        %v1076 = vld [vmem:[%s1074 + $0x8] sm:$0xff]
        %v1077 = vmul.f32 %v916, %v1075
        %v1078 = vmul.f32 %v949, %v1076
        %v1081 = vrot.slane %v1077, 1
        %v1082 = vrot.slane %v1078, 1
        %v1083 = vsel %vm237, %v1081, %v1082
        %1084 = vrot.lane.b32.xlu0 %v1081, 127
        %v1085 = vpop.permute.xlu0 %1084
        %1086 = vrot.lane.b32.xlu0 %v1083, 127
        %v1087 = vpop.permute.xlu0 %1086
        %1088 = vrot.lane.b32.xlu0 %v1082, 127
        %v1089 = vpop.permute.xlu0 %1088
        %v1093 = vadd.f32 %v1068, %v1085
        %v1094 = vadd.f32 %v1069, %v1085
        %v1095 = vadd.f32 %v1070, %v1087
        %v1096 = vadd.f32 %v1071, %v1087
        %v1097 = vadd.f32 %v1072, %v1089
        %v1098 = vadd.f32 %v1073, %v1089
        %s1099 = scalar_lea.vmem %s210, 400
        %v1100 = vld [vmem:[%s1099] sm:$0xff]
        %v1101 = vld [vmem:[%s1099 + $0x8] sm:$0xff]
        %v1104 = vrot.slane %v1100, 7
        %v1105 = vrot.slane %v1101, 7
        %v1106 = vsel %vm310, %v1104, %v1105
        %v1110 = vmul.f32 %v988, %v1104
        %v1111 = vmul.f32 %v949, %v1106
        %v1112 = vmul.f32 %v990, %v1105
        %v1116 = vrot.slane %v1110, 2
        %v1117 = vrot.slane %v1111, 2
        %v1118 = vsel %vm335, %v1116, %v1117
        %v1119 = vrot.slane %v1112, 2
        %v1120 = vsel %vm335, %v1117, %v1119
        %1121 = vrot.lane.b32.xlu0 %v1116, 127
        %v1122 = vpop.permute.xlu0 %1121
        %1123 = vrot.lane.b32.xlu0 %v1118, 127
        %v1124 = vpop.permute.xlu0 %1123
        %1125 = vrot.lane.b32.xlu0 %v1120, 127
        %v1126 = vpop.permute.xlu0 %1125
        %v1130 = vadd.f32 %v1093, %v1122
        %v1131 = vadd.f32 %v1094, %v1122
        %v1132 = vadd.f32 %v1095, %v1124
        %v1133 = vadd.f32 %v1096, %v1124
        %v1134 = vadd.f32 %v1097, %v1126
        %v1135 = vadd.f32 %v1098, %v1126
        %s1136 = scalar_lea.vmem %s210, 320
        %v1137 = vld [vmem:[%s1136] sm:$0xff]
        %v1138 = vld [vmem:[%s1136 + $0x8] sm:$0xff]
        %v1141 = vrot.slane %v1137, 1
        %v1142 = vrot.slane %v1138, 1
        %v1143 = vsel %vm237, %v1141, %v1142
        %1144 = vrot.lane.b32.xlu0 %v1141, 1
        %v1145 = vpop.permute.xlu0 %1144
        %1146 = vrot.lane.b32.xlu0 %v1143, 1
        %v1147 = vpop.permute.xlu0 %1146
        %1148 = vrot.lane.b32.xlu0 %v1142, 1
        %v1149 = vpop.permute.xlu0 %1148
        %v1153 = vmul.f32 %v914, %v1145
        %v1154 = vmul.f32 %v916, %v1147
        %v1155 = vmul.f32 %v918, %v1149
        %1159 = vrot.lane.b32.xlu0 %v1153, 126
        %v1160 = vpop.permute.xlu0 %1159
        %1161 = vrot.lane.b32.xlu0 %v1154, 126
        %v1162 = vpop.permute.xlu0 %1161
        %1163 = vrot.lane.b32.xlu0 %v1155, 126
        %v1164 = vpop.permute.xlu0 %1163
        %v1168 = vadd.f32 %v1130, %v1160
        %v1169 = vadd.f32 %v1131, %v1160
        %v1170 = vadd.f32 %v1132, %v1162
        %v1171 = vadd.f32 %v1133, %v1162
        %v1172 = vadd.f32 %v1134, %v1164
        %v1173 = vadd.f32 %v1135, %v1164
        %s1174 = scalar_lea.vmem %s210, 368
        %v1175 = vld [vmem:[%s1174] sm:$0xff]
        %v1176 = vld [vmem:[%s1174 + $0x8] sm:$0xff]
        %1179 = vrot.lane.b32.xlu0 %v1175, 1
        %v1180 = vpop.permute.xlu0 %1179
        %1181 = vrot.lane.b32.xlu0 %v1176, 1
        %v1182 = vpop.permute.xlu0 %1181
        %v1185 = vmul.f32 %v916, %v1180
        %v1186 = vmul.f32 %v949, %v1182
        %v1189 = vrot.slane %v1185, 1
        %v1190 = vrot.slane %v1186, 1
        %v1191 = vsel %vm237, %v1189, %v1190
        %1192 = vrot.lane.b32.xlu0 %v1189, 126
        %v1193 = vpop.permute.xlu0 %1192
        %1194 = vrot.lane.b32.xlu0 %v1191, 126
        %v1195 = vpop.permute.xlu0 %1194
        %1196 = vrot.lane.b32.xlu0 %v1190, 126
        %v1197 = vpop.permute.xlu0 %1196
        %v1201 = vadd.f32 %v1168, %v1193
        %v1202 = vadd.f32 %v1169, %v1193
        %v1203 = vadd.f32 %v1170, %v1195
        %v1204 = vadd.f32 %v1171, %v1195
        %v1205 = vadd.f32 %v1172, %v1197
        %v1206 = vadd.f32 %v1173, %v1197
        %s1207 = scalar_lea.vmem %s210, 416
        %v1208 = vld [vmem:[%s1207] sm:$0xff]
        %v1209 = vld [vmem:[%s1207 + $0x8] sm:$0xff]
        %v1212 = vrot.slane %v1208, 7
        %v1213 = vrot.slane %v1209, 7
        %v1214 = vsel %vm310, %v1212, %v1213
        %1215 = vrot.lane.b32.xlu0 %v1212, 1
        %v1216 = vpop.permute.xlu0 %1215
        %1217 = vrot.lane.b32.xlu0 %v1214, 1
        %v1218 = vpop.permute.xlu0 %1217
        %1219 = vrot.lane.b32.xlu0 %v1213, 1
        %v1220 = vpop.permute.xlu0 %1219
        %v1224 = vmul.f32 %v988, %v1216
        %v1225 = vmul.f32 %v949, %v1218
        %v1226 = vmul.f32 %v990, %v1220
        %v1230 = vrot.slane %v1224, 2
        %v1231 = vrot.slane %v1225, 2
        %v1232 = vsel %vm335, %v1230, %v1231
        %v1233 = vrot.slane %v1226, 2
        %v1234 = vsel %vm335, %v1231, %v1233
        %1235 = vrot.lane.b32.xlu0 %v1230, 126
        %v1236 = vpop.permute.xlu0 %1235
        %1237 = vrot.lane.b32.xlu0 %v1232, 126
        %v1238 = vpop.permute.xlu0 %1237
        %1239 = vrot.lane.b32.xlu0 %v1234, 126
        %v1240 = vpop.permute.xlu0 %1239
        %v1244 = vadd.f32 %v1201, %v1236
        %v1245 = vadd.f32 %v1202, %v1236
        %v1246 = vadd.f32 %v1203, %v1238
        %v1247 = vadd.f32 %v1204, %v1238
        %v1248 = vadd.f32 %v1205, %v1240
        %v1249 = vadd.f32 %v1206, %v1240
        %s1250 = scalar_lea.vmem %s199, 48
        %v1251 = vld [vmem:[%s1250] sm:$0xff]
        %v1252 = vld [vmem:[%s1250 + $0x8] sm:$0xff]
        %1253 = vst.msk [vmem:[#allocation3 + $0x18] sm:$0xff] %vm224, %v1251
        %1254 = vst.msk [vmem:[#allocation3 + $0x28] sm:$0xff] %vm224, %v1252
        %v1255 = vld [vmem:[#allocation3] sm:$0x80]
        %v1256 = vld [vmem:[#allocation3 + $0x8] sm:$0x80]
        %v1257 = vld [vmem:[#allocation3 + $0x10] sm:$0xff]
        %v1258 = vld [vmem:[#allocation3 + $0x18] sm:$0xff]
        %v1259 = vld [vmem:[#allocation3 + $0x20] sm:$0x7f]
        %v1260 = vld [vmem:[#allocation3 + $0x28] sm:$0x7f]
        %s1261 = scalar_lea.vmem %s210, 432
        %v1262 = vld [vmem:[%s1261] sm:$0xff]
        %v1263 = vld [vmem:[%s1261 + $0x8] sm:$0xff]
        %v1266 = vrot.slane %v1262, 1
        %v1267 = vrot.slane %v1263, 1
        %v1268 = vsel %vm237, %v1266, %v1267
        %1269 = vrot.lane.b32.xlu0 %v1266, 127
        %v1270 = vpop.permute.xlu0 %1269
        %1271 = vrot.lane.b32.xlu0 %v1268, 127
        %v1272 = vpop.permute.xlu0 %1271
        %1273 = vrot.lane.b32.xlu0 %v1267, 127
        %v1274 = vpop.permute.xlu0 %1273
        %v1278 = vmul.f32 %v1255, %v1270
        %v1279 = vmul.f32 %v1256, %v1270
        %v1280 = vmul.f32 %v1257, %v1272
        %v1281 = vmul.f32 %v1258, %v1272
        %v1282 = vmul.f32 %v1259, %v1274
        %v1283 = vmul.f32 %v1260, %v1274
        %v1284 = vadd.f32 %v1244, %v1278
        %v1285 = vadd.f32 %v1245, %v1279
        %v1286 = vadd.f32 %v1246, %v1280
        %v1287 = vadd.f32 %v1247, %v1281
        %v1288 = vadd.f32 %v1248, %v1282
        %v1289 = vadd.f32 %v1249, %v1283
        %v1290 = vld [vmem:[#allocation3 + $0x20] sm:$0xff]
        %v1291 = vld [vmem:[#allocation3 + $0x28] sm:$0xff]
        %s1292 = scalar_lea.vmem %s210, 480
        %v1293 = vld [vmem:[%s1292] sm:$0xff]
        %v1294 = vld [vmem:[%s1292 + $0x8] sm:$0xff]
        %1297 = vrot.lane.b32.xlu0 %v1293, 127
        %v1298 = vpop.permute.xlu0 %1297
        %1299 = vrot.lane.b32.xlu0 %v1294, 127
        %v1300 = vpop.permute.xlu0 %1299
        %v1303 = vmul.f32 %v1257, %v1298
        %v1304 = vmul.f32 %v1258, %v1298
        %v1305 = vmul.f32 %v1290, %v1300
        %v1306 = vmul.f32 %v1291, %v1300
        %v1311 = vrot.slane %v1303, 1
        %v1312 = vrot.slane %v1304, 1
        %v1313 = vrot.slane %v1305, 1
        %v1314 = vsel %vm237, %v1311, %v1313
        %v1315 = vrot.slane %v1306, 1
        %v1316 = vsel %vm237, %v1312, %v1315
        %v1323 = vadd.f32 %v1284, %v1311
        %v1324 = vadd.f32 %v1285, %v1312
        %v1325 = vadd.f32 %v1286, %v1314
        %v1326 = vadd.f32 %v1287, %v1316
        %v1327 = vadd.f32 %v1288, %v1313
        %v1328 = vadd.f32 %v1289, %v1315
        %v1329 = vld [vmem:[#allocation3 + $0x10] sm:$0xfe]
        %v1330 = vld [vmem:[#allocation3 + $0x18] sm:$0xfe]
        %v1331 = vld [vmem:[#allocation3 + $0x30] sm:$0x1]
        %v1332 = vld [vmem:[#allocation3 + $0x38] sm:$0x1]
        %s1333 = scalar_lea.vmem %s210, 528
        %v1334 = vld [vmem:[%s1333] sm:$0xff]
        %v1335 = vld [vmem:[%s1333 + $0x8] sm:$0xff]
        %v1338 = vrot.slane %v1334, 7
        %v1339 = vrot.slane %v1335, 7
        %v1340 = vsel %vm310, %v1338, %v1339
        %1341 = vrot.lane.b32.xlu0 %v1338, 127
        %v1342 = vpop.permute.xlu0 %1341
        %1343 = vrot.lane.b32.xlu0 %v1340, 127
        %v1344 = vpop.permute.xlu0 %1343
        %1345 = vrot.lane.b32.xlu0 %v1339, 127
        %v1346 = vpop.permute.xlu0 %1345
        %v1350 = vmul.f32 %v1329, %v1342
        %v1351 = vmul.f32 %v1330, %v1342
        %v1352 = vmul.f32 %v1290, %v1344
        %v1353 = vmul.f32 %v1291, %v1344
        %v1354 = vmul.f32 %v1331, %v1346
        %v1355 = vmul.f32 %v1332, %v1346
        %v1362 = vrot.slane %v1350, 2
        %v1363 = vrot.slane %v1351, 2
        %v1364 = vrot.slane %v1352, 2
        %v1365 = vsel %vm335, %v1362, %v1364
        %v1366 = vrot.slane %v1353, 2
        %v1367 = vsel %vm335, %v1363, %v1366
        %v1368 = vrot.slane %v1354, 2
        %v1369 = vsel %vm335, %v1364, %v1368
        %v1370 = vrot.slane %v1355, 2
        %v1371 = vsel %vm335, %v1366, %v1370
        %v1378 = vadd.f32 %v1323, %v1362
        %v1379 = vadd.f32 %v1324, %v1363
        %v1380 = vadd.f32 %v1325, %v1365
        %v1381 = vadd.f32 %v1326, %v1367
        %v1382 = vadd.f32 %v1327, %v1369
        %v1383 = vadd.f32 %v1328, %v1371
        %s1384 = scalar_lea.vmem %s210, 448
        %v1385 = vld [vmem:[%s1384] sm:$0xff]
        %v1386 = vld [vmem:[%s1384 + $0x8] sm:$0xff]
        %v1389 = vrot.slane %v1385, 1
        %v1390 = vrot.slane %v1386, 1
        %v1391 = vsel %vm237, %v1389, %v1390
        %v1395 = vmul.f32 %v1256, %v1389
        %v1396 = vmul.f32 %v1258, %v1391
        %v1397 = vmul.f32 %v1260, %v1390
        %1401 = vrot.lane.b32.xlu0 %v1395, 127
        %v1402 = vpop.permute.xlu0 %1401
        %1403 = vrot.lane.b32.xlu0 %v1396, 127
        %v1404 = vpop.permute.xlu0 %1403
        %1405 = vrot.lane.b32.xlu0 %v1397, 127
        %v1406 = vpop.permute.xlu0 %1405
        %v1410 = vadd.f32 %v1378, %v1402
        %v1411 = vadd.f32 %v1379, %v1402
        %v1412 = vadd.f32 %v1380, %v1404
        %v1413 = vadd.f32 %v1381, %v1404
        %v1414 = vadd.f32 %v1382, %v1406
        %v1415 = vadd.f32 %v1383, %v1406
        %s1416 = scalar_lea.vmem %s210, 496
        %v1417 = vld [vmem:[%s1416] sm:$0xff]
        %v1418 = vld [vmem:[%s1416 + $0x8] sm:$0xff]
        %v1419 = vmul.f32 %v1258, %v1417
        %v1420 = vmul.f32 %v1291, %v1418
        %v1423 = vrot.slane %v1419, 1
        %v1424 = vrot.slane %v1420, 1
        %v1425 = vsel %vm237, %v1423, %v1424
        %1426 = vrot.lane.b32.xlu0 %v1423, 127
        %v1427 = vpop.permute.xlu0 %1426
        %1428 = vrot.lane.b32.xlu0 %v1425, 127
        %v1429 = vpop.permute.xlu0 %1428
        %1430 = vrot.lane.b32.xlu0 %v1424, 127
        %v1431 = vpop.permute.xlu0 %1430
        %v1435 = vadd.f32 %v1410, %v1427
        %v1436 = vadd.f32 %v1411, %v1427
        %v1437 = vadd.f32 %v1412, %v1429
        %v1438 = vadd.f32 %v1413, %v1429
        %v1439 = vadd.f32 %v1414, %v1431
        %v1440 = vadd.f32 %v1415, %v1431
        %s1441 = scalar_lea.vmem %s210, 544
        %v1442 = vld [vmem:[%s1441] sm:$0xff]
        %v1443 = vld [vmem:[%s1441 + $0x8] sm:$0xff]
        %v1446 = vrot.slane %v1442, 7
        %v1447 = vrot.slane %v1443, 7
        %v1448 = vsel %vm310, %v1446, %v1447
        %v1452 = vmul.f32 %v1330, %v1446
        %v1453 = vmul.f32 %v1291, %v1448
        %v1454 = vmul.f32 %v1332, %v1447
        %v1458 = vrot.slane %v1452, 2
        %v1459 = vrot.slane %v1453, 2
        %v1460 = vsel %vm335, %v1458, %v1459
        %v1461 = vrot.slane %v1454, 2
        %v1462 = vsel %vm335, %v1459, %v1461
        %1463 = vrot.lane.b32.xlu0 %v1458, 127
        %v1464 = vpop.permute.xlu0 %1463
        %1465 = vrot.lane.b32.xlu0 %v1460, 127
        %v1466 = vpop.permute.xlu0 %1465
        %1467 = vrot.lane.b32.xlu0 %v1462, 127
        %v1468 = vpop.permute.xlu0 %1467
        %v1472 = vadd.f32 %v1435, %v1464
        %v1473 = vadd.f32 %v1436, %v1464
        %v1474 = vadd.f32 %v1437, %v1466
        %v1475 = vadd.f32 %v1438, %v1466
        %v1476 = vadd.f32 %v1439, %v1468
        %v1477 = vadd.f32 %v1440, %v1468
        %s1478 = scalar_lea.vmem %s210, 464
        %v1479 = vld [vmem:[%s1478] sm:$0xff]
        %v1480 = vld [vmem:[%s1478 + $0x8] sm:$0xff]
        %v1483 = vrot.slane %v1479, 1
        %v1484 = vrot.slane %v1480, 1
        %v1485 = vsel %vm237, %v1483, %v1484
        %1486 = vrot.lane.b32.xlu0 %v1483, 1
        %v1487 = vpop.permute.xlu0 %1486
        %1488 = vrot.lane.b32.xlu0 %v1485, 1
        %v1489 = vpop.permute.xlu0 %1488
        %1490 = vrot.lane.b32.xlu0 %v1484, 1
        %v1491 = vpop.permute.xlu0 %1490
        %v1495 = vmul.f32 %v1256, %v1487
        %v1496 = vmul.f32 %v1258, %v1489
        %v1497 = vmul.f32 %v1260, %v1491
        %1501 = vrot.lane.b32.xlu0 %v1495, 126
        %v1502 = vpop.permute.xlu0 %1501
        %1503 = vrot.lane.b32.xlu0 %v1496, 126
        %v1504 = vpop.permute.xlu0 %1503
        %1505 = vrot.lane.b32.xlu0 %v1497, 126
        %v1506 = vpop.permute.xlu0 %1505
        %v1510 = vadd.f32 %v1472, %v1502
        %v1511 = vadd.f32 %v1473, %v1502
        %v1512 = vadd.f32 %v1474, %v1504
        %v1513 = vadd.f32 %v1475, %v1504
        %v1514 = vadd.f32 %v1476, %v1506
        %v1515 = vadd.f32 %v1477, %v1506
        %s1516 = scalar_lea.vmem %s210, 512
        %v1517 = vld [vmem:[%s1516] sm:$0xff]
        %v1518 = vld [vmem:[%s1516 + $0x8] sm:$0xff]
        %1521 = vrot.lane.b32.xlu0 %v1517, 1
        %v1522 = vpop.permute.xlu0 %1521
        %1523 = vrot.lane.b32.xlu0 %v1518, 1
        %v1524 = vpop.permute.xlu0 %1523
        %v1527 = vmul.f32 %v1258, %v1522
        %v1528 = vmul.f32 %v1291, %v1524
        %v1531 = vrot.slane %v1527, 1
        %v1532 = vrot.slane %v1528, 1
        %v1533 = vsel %vm237, %v1531, %v1532
        %1534 = vrot.lane.b32.xlu0 %v1531, 126
        %v1535 = vpop.permute.xlu0 %1534
        %1536 = vrot.lane.b32.xlu0 %v1533, 126
        %v1537 = vpop.permute.xlu0 %1536
        %1538 = vrot.lane.b32.xlu0 %v1532, 126
        %v1539 = vpop.permute.xlu0 %1538
        %v1543 = vadd.f32 %v1510, %v1535
        %v1544 = vadd.f32 %v1511, %v1535
        %v1545 = vadd.f32 %v1512, %v1537
        %v1546 = vadd.f32 %v1513, %v1537
        %v1547 = vadd.f32 %v1514, %v1539
        %v1548 = vadd.f32 %v1515, %v1539
        %s1549 = scalar_lea.vmem %s210, 560
        %v1550 = vld [vmem:[%s1549] sm:$0xff]
        %v1551 = vld [vmem:[%s1549 + $0x8] sm:$0xff]
        %v1554 = vrot.slane %v1550, 7
        %v1555 = vrot.slane %v1551, 7
        %v1556 = vsel %vm310, %v1554, %v1555
        %1557 = vrot.lane.b32.xlu0 %v1554, 1
        %v1558 = vpop.permute.xlu0 %1557
        %1559 = vrot.lane.b32.xlu0 %v1556, 1
        %v1560 = vpop.permute.xlu0 %1559
        %1561 = vrot.lane.b32.xlu0 %v1555, 1
        %v1562 = vpop.permute.xlu0 %1561
        %v1566 = vmul.f32 %v1330, %v1558
        %v1567 = vmul.f32 %v1291, %v1560
        %v1568 = vmul.f32 %v1332, %v1562
        %v1572 = vrot.slane %v1566, 2
        %v1573 = vrot.slane %v1567, 2
        %v1574 = vsel %vm335, %v1572, %v1573
        %v1575 = vrot.slane %v1568, 2
        %v1576 = vsel %vm335, %v1573, %v1575
        %1577 = vrot.lane.b32.xlu0 %v1572, 126
        %v1578 = vpop.permute.xlu0 %1577
        %1579 = vrot.lane.b32.xlu0 %v1574, 126
        %v1580 = vpop.permute.xlu0 %1579
        %1581 = vrot.lane.b32.xlu0 %v1576, 126
        %v1582 = vpop.permute.xlu0 %1581
        %v1586 = vadd.f32 %v1543, %v1578
        %v1587 = vadd.f32 %v1544, %v1578
        %v1588 = vadd.f32 %v1545, %v1580
        %v1589 = vadd.f32 %v1546, %v1580
        %v1590 = vadd.f32 %v1547, %v1582
        %v1591 = vadd.f32 %v1548, %v1582
        %1598 = vrot.lane.b32.xlu0 %v1586, 1
        %v1599 = vpop.permute.xlu0 %1598
        %1600 = vrot.lane.b32.xlu0 %v1587, 1
        %v1601 = vpop.permute.xlu0 %1600
        %1602 = vrot.lane.b32.xlu0 %v1588, 1
        %v1603 = vpop.permute.xlu0 %1602
        %1604 = vrot.lane.b32.xlu0 %v1589, 1
        %v1605 = vpop.permute.xlu0 %1604
        %1606 = vrot.lane.b32.xlu0 %v1590, 1
        %v1607 = vpop.permute.xlu0 %1606
        %1608 = vrot.lane.b32.xlu0 %v1591, 1
        %v1609 = vpop.permute.xlu0 %1608
        %vm1610 = vcmask 7168
        %v1611 = vsel %vm1610, %v1599, %v1601
        %v1612 = vsel %vm1610, %v1603, %v1605
        %v1613 = vsel %vm1610, %v1607, %v1609
        %vm1617 = vcmask 130055
        %1618 = vst.msk [vmem:[%s189 - $0x7] sm:$0x80] %vm1617, %v1611
        %1619 = vst.msk [vmem:[%s189 + $0x1] sm:$0xff] %vm224, %v1612
        %vm1620 = vcmask 129024
        %1621 = vst.msk [vmem:[%s189 + $0x9] sm:$0x7f] %vm1620, %v1613
        %s1622 = sand.u32 %s92, 1
        %s1623 = scalar_lea.sflag [#allocation5], %s1622
        %s1624 = sand.u32 %s92, 1
        %s1625 = smul.addr %s1624, 16
        %s1626 = scalar_lea.vmem [#allocation4], %s1625
        // Predicated region
        $region29: #{tpu_custom_call.1} parent=27 // pred_check
          %p1627 = pneg %p102
        $region30: #{tpu_custom_call.1} parent=27 // pred_check_branch
          %1629 = sbr.rel (%p1627) target = $region32
        $region31: #{tpu_custom_call.1} parent=27 // pred_region
          %1631 = vsyncadd %s1623, 0
          %s1632 = smul.addr %s20, 2
          %s1633 = smul.addr %s1632, 8
          %s1634 = scalar_lea.hbm %s2, %s1633
          %s1635 = sshll.u32 %s1626, 4
          %s1636 = int_to_ptr.vmem [resolvable:$true] %s1635
          %s1637 = sshll.u32 %s1634, 4
          %s1638 = int_to_ptr.hbm [resolvable:$true] %s1637
          %1643 = dma.vmem_to_hbm [thread:$0]  %s1636, 256, %s1638, %s1623, 128, 128, 8
        $region32: #{tpu_custom_call.1} parent=27 // pred_fallthru
          _
      $region28: #{tpu_custom_call.1} parent=5 // pred_fallthru
        _
      %p1644 = scmp.le.s32.totalorder 2, %s11
      // Predicated region
      $region33: #{tpu_custom_call.1} parent=5 // pred_check
        %p1645 = pneg %p1644
      $region34: #{tpu_custom_call.1} parent=5 // pred_check_branch
        %1647 = sbr.rel (%p1645) target = $region36
      $region35: #{tpu_custom_call.1} parent=5 // pred_region
        %s1648 = ssub.s32 %s11, 2
        // Predicated region
        $region37: #{tpu_custom_call.1} parent=35 // pred_check
          %p1649 = pneg %p108
        $region38: #{tpu_custom_call.1} parent=35 // pred_check_branch
          %1651 = sbr.rel (%p1649) target = $region40
        $region39: #{tpu_custom_call.1} parent=35 // pred_region
          %s1652 = sand.u32 %s93, 1
          %s1653 = scalar_lea.sflag [#allocation5], %s1652
          %s1654 = sand.u32 %s93, 1
          %s1655 = smul.addr %s1654, 16
          %s1656 = scalar_lea.vmem [#allocation4], %s1655
          %1658 = dma.done %s1653, 256
        $region40: #{tpu_custom_call.1} parent=35 // pred_fallthru
          _
      $region36: #{tpu_custom_call.1} parent=5 // pred_fallthru
        _
    $region6: #{tpu_custom_call.1} parent=1 // loop_footer
      %s15 = sadd.s32 1, %s11
    $region7: #{tpu_custom_call.1} parent=1 // loop_footer_branch
      %10 = sbr.rel target = $region3
    $region8: #{tpu_custom_call.1} parent=1 // loop_exit
      _
    %1659 = vsyncpa [#allocation5], 1
    %s1660 = scalar_lea.sflag [#allocation5], 1
    %1661 = vsyncpa %s1660, 1

</llo_original>
